<compile_context>
chip_gen: v6e
topology: v6e:2x2x1
jax: 0.10.0
libtpu: 0.0.40
codegen_flags: <defaults>
</compile_context>

<pallas_src>
import functools

import jax
import jax.numpy as jnp
from jax.experimental import pallas as pl
from jax.experimental.pallas import tpu as pltpu

F32 = jnp.float32
BF16 = jnp.bfloat16
MB = 1024 * 1024


def _round_up(a, b):
    return (a + b - 1) // b * b


def _pad2(a, rows, cols, dtype):
    out = jnp.zeros((rows, cols), dtype)
    return out.at[: a.shape[0], : a.shape[1]].set(a.astype(dtype))


# ---------------- fused single-kernel path (whole graph resident in VMEM) ----------------

def _gin_fused_kernel(a_ref, x_ref,
                      w1, b1, w2, b2, w3x, w3h, b3, w4, b4, w5, b5,
                      o_ref):
    a = a_ref[...]                                        # [Np, Np] bf16 adjacency
    x = x_ref[...]                                        # [Np, Hp] f32
    # conv1 pre-MLP: A @ x + (1 + eps) * x, eps = 0
    cx = jnp.dot(a, x.astype(BF16), preferred_element_type=F32) + x
    h = jnp.maximum(jnp.dot(cx.astype(BF16), w1[...], preferred_element_type=F32) + b1[...], 0.0)
    h = jnp.maximum(jnp.dot(h.astype(BF16), w2[...], preferred_element_type=F32) + b2[...], 0.0)
    # conv2 pre-MLP, concat-free: A @ [x, h] + [x, h] == [cx, ch]
    ch = jnp.dot(a, h.astype(BF16), preferred_element_type=F32) + h
    t = jnp.dot(cx.astype(BF16), w3x[...], preferred_element_type=F32)
    t = t + jnp.dot(ch.astype(BF16), w3h[...], preferred_element_type=F32)
    t = jnp.maximum(t + b3[...], 0.0)
    t = jnp.maximum(jnp.dot(t.astype(BF16), w4[...], preferred_element_type=F32) + b4[...], 0.0)
    o_ref[...] = jnp.maximum(jnp.dot(t.astype(BF16), w5[...], preferred_element_type=F32) + b5[...], 0.0)


# ---------------- two-pass tiled path ----------------
# pass 1: agg1 = A @ x + x (f32, residual folded in), h = MLP1(agg1) stored in bf16.

def _conv1_kernel(a_ref, xk_ref, xi_ref, w1, b1, w2, b2,
                  agg1_ref, h_ref, *, tk, resident):
    k = pl.program_id(1)

    @pl.when(k == 0)
    def _():
        agg1_ref[...] = jnp.zeros_like(agg1_ref)

    if resident:                                   # VMEM-resident x: slice rows in-kernel
        xk = xk_ref[pl.ds(pl.multiple_of(k * tk, tk), tk), :]
    else:                                          # streaming fallback: [tk, Hp] block
        xk = xk_ref[...]
    # agg1 output block is resident across k (index map ignores k) -> accumulator.
    agg1_ref[...] += jnp.dot(a_ref[...], xk, preferred_element_type=F32)

    @pl.when(k == pl.num_programs(1) - 1)
    def _():
        agg1_ref[...] += xi_ref[...]               # fold "+ x" residual (eps = 0)
        cx = agg1_ref[...]
        h = jnp.maximum(jnp.dot(cx.astype(BF16), w1[...], preferred_element_type=F32) + b1[...], 0.0)
        h = jnp.maximum(jnp.dot(h.astype(BF16), w2[...], preferred_element_type=F32) + b2[...], 0.0)
        h_ref[...] = h.astype(h_ref.dtype)


# pass 2: conv2 (reusing agg1 = A @ x + x) + linear5 + relu.  Output block doubles as
# the f32 accumulator for A @ h (resident across k), no extra scratch.

def _conv2_kernel(a_ref, hk_ref, hi_ref, agg1_ref,
                  w3x, w3h, b3, w4, b4, w5, b5,
                  o_ref, *, tk, resident):
    k = pl.program_id(1)

    @pl.when(k == 0)
    def _():
        o_ref[...] = jnp.zeros_like(o_ref)

    if resident:
        hk = hk_ref[pl.ds(pl.multiple_of(k * tk, tk), tk), :]
    else:
        hk = hk_ref[...]
    # Only the "h" half of conv2's aggregation needs a matmul; A @ x is reused.
    o_ref[...] += jnp.dot(a_ref[...], hk, preferred_element_type=F32)

    @pl.when(k == pl.num_programs(1) - 1)
    def _():
        cx = agg1_ref[...]                         # A @ x + x   (f32, from pass 1)
        ch = o_ref[...] + hi_ref[...].astype(F32)  # A @ h + h
        # concat-free linear3:  c @ W3 == cx @ W3[:H] + ch @ W3[H:]
        t = jnp.dot(cx.astype(BF16), w3x[...], preferred_element_type=F32)
        t = t + jnp.dot(ch.astype(BF16), w3h[...], preferred_element_type=F32)
        t = jnp.maximum(t + b3[...], 0.0)
        t = jnp.maximum(jnp.dot(t.astype(BF16), w4[...], preferred_element_type=F32) + b4[...], 0.0)
        o_ref[...] = jnp.maximum(jnp.dot(t.astype(BF16), w5[...], preferred_element_type=F32) + b5[...], 0.0)


# --------------------------------- host wrapper ---------------------------------

def gin_forward(x, adj, params, *, tile_n=512, force_tiled=False):
    """x: [N, H] node features, adj: [N, N] dense adjacency (adj[i, j] = #edges j->i)."""
    N, H = x.shape
    assert adj.shape == (N, N)
    assert tile_n % 128 == 0
    (w1t, b1), (w2t, b2), (w3t, b3), (w4t, b4), (w5t, b5) = params

    Hp = _round_up(H, 128)          # lane-dense feature dim (unmasked stores)

    # Linear weights pre-transposed to [in, out]; linear3 split into x / h halves.
    w1p = _pad2(w1t, Hp, Hp, BF16); b1p = _pad2(b1, 1, Hp, F32)
    w2p = _pad2(w2t, Hp, Hp, BF16); b2p = _pad2(b2, 1, Hp, F32)
    w3xp = _pad2(w3t[:H], Hp, Hp, BF16)
    w3hp = _pad2(w3t[H:], Hp, Hp, BF16)
    b3p = _pad2(b3, 1, Hp, F32)
    w4p = _pad2(w4t, Hp, Hp, BF16); b4p = _pad2(b4, 1, Hp, F32)
    w5p = _pad2(w5t, Hp, Hp, BF16); b5p = _pad2(b5, 1, Hp, F32)

    # ---------------- fused path: whole padded graph fits in VMEM ----------------
    Nf = _round_up(N, 128)
    fused_vmem = (2 * Nf * Nf * 2            # adjacency (bf16, double-buffered)
                  + 4 * Nf * Hp * 4          # x in + out (f32, double-buffered)
                  + 8 * Nf * Hp * 4          # live f32 intermediates
                  + 2 * 6 * Hp * Hp * 2)     # weights
    if (not force_tiled) and fused_vmem <= 24 * MB:
        adj_p = _pad2(adj, Nf, Nf, BF16)     # small integer counts -> exact in bf16
        x_p = _pad2(x, Nf, Hp, F32)
        full = lambda r, c: pl.BlockSpec((r, c), lambda i: (0, 0))
        out = pl.pallas_call(
            _gin_fused_kernel,
            grid=(1,),
            in_specs=[full(Nf, Nf), full(Nf, Hp),
                      full(Hp, Hp), full(1, Hp), full(Hp, Hp), full(1, Hp),
                      full(Hp, Hp), full(Hp, Hp), full(1, Hp),
                      full(Hp, Hp), full(1, Hp), full(Hp, Hp), full(1, Hp)],
            out_specs=full(Nf, Hp),
            out_shape=jax.ShapeDtypeStruct((Nf, Hp), F32),
            compiler_params=pltpu.CompilerParams(
                dimension_semantics=("arbitrary",),
                vmem_limit_bytes=int(min(56 * MB, max(32 * MB, fused_vmem)))),
        )(adj_p, x_p, w1p, b1p, w2p, b2p, w3xp, w3hp, b3p, w4p, b4p, w5p, b5p)
        return out[:N, :H]

    # ---------------- two-pass tiled path ----------------
    tm = tk = min(tile_n, _round_up(N, 128))
    Np = _round_up(N, tm)
    grid = (Np // tm, Np // tk)

    adj_p = _pad2(adj, Np, Np, BF16)
    x_f32 = _pad2(x, Np, Hp, F32)            # residual add stays f32
    x_bf = x_f32.astype(BF16)                # MXU / streamed operand

    # Keep the streamed feature operand (x in pass 1, h in pass 2) VMEM-resident
    # when it fits (accounting for double-buffered allocation); else stream blocks.
    resident = (2 * Np * Hp * 2) <= 16 * MB

    a_spec = pl.BlockSpec((tm, tk), lambda i, k: (i, k))           # adjacency slab
    if resident:
        featk_spec = pl.BlockSpec((Np, Hp), lambda i, k: (0, 0))   # whole array, DMA'd once
    else:
        featk_spec = pl.BlockSpec((tk, Hp), lambda i, k: (k, 0))   # streamed row block
    feati_spec = pl.BlockSpec((tm, Hp), lambda i, k: (i, 0))       # rows being produced
    w_spec = pl.BlockSpec((Hp, Hp), lambda i, k: (0, 0))           # VMEM-resident weights
    b_spec = pl.BlockSpec((1, Hp), lambda i, k: (0, 0))

    feat_stream_bytes = (2 * Np * Hp * 2) if resident else (2 * tk * Hp * 2)
    est_vmem = (2 * tm * tk * 2 + feat_stream_bytes
                + 2 * tm * Hp * 4 + 2 * tm * Hp * 2 + 2 * tm * Hp * 4
                + 2 * 4 * Hp * Hp * 2 + 6 * tm * Hp * 4)
    cparams = pltpu.CompilerParams(
        dimension_semantics=("parallel", "arbitrary"),
        vmem_limit_bytes=int(min(56 * MB, max(32 * MB, est_vmem))))

    # pass 1: agg1 = A @ x + x (f32), h = MLP1(agg1) (bf16)
    agg1, h = pl.pallas_call(
        functools.partial(_conv1_kernel, tk=tk, resident=resident),
        grid=grid,
        in_specs=[a_spec, featk_spec, feati_spec, w_spec, b_spec, w_spec, b_spec],
        out_specs=[feati_spec, feati_spec],
        out_shape=[jax.ShapeDtypeStruct((Np, Hp), F32),
                   jax.ShapeDtypeStruct((Np, Hp), BF16)],
        compiler_params=cparams,
    )(adj_p, x_bf, x_f32, w1p, b1p, w2p, b2p)

    # pass 2: conv2 (reusing agg1) + linear5 + relu
    out = pl.pallas_call(
        functools.partial(_conv2_kernel, tk=tk, resident=resident),
        grid=grid,
        in_specs=[a_spec, featk_spec, feati_spec, feati_spec,
                  w_spec, w_spec, b_spec, w_spec, b_spec, w_spec, b_spec],
        out_specs=feati_spec,
        out_shape=jax.ShapeDtypeStruct((Np, Hp), F32),
        compiler_params=cparams,
    )(adj_p, h, h, agg1, w3xp, w3hp, b3p, w4p, b4p, w5p, b5p)

    return out[:N, :H]


# --------------------------------- test harness ---------------------------------

def make_params(key, H):
    """Deterministic Linear params; stored pre-transposed [in, out], bias as [1, out]."""
    ks = jax.random.split(key, 10)

    def lin(kw, kb, fan_in, fan_out):
        bound = 1.0 / jnp.sqrt(fan_in)
        w = jax.random.uniform(kw, (fan_out, fan_in), jnp.float32, -bound, bound)
        b = jax.random.uniform(kb, (fan_out,), jnp.float32, -bound, bound)
        return w.T, b.reshape(1, fan_out)

    p1 = lin(ks[0], ks[1], H, H)          # linear1
    p2 = lin(ks[2], ks[3], H, H)          # linear2
    p3 = lin(ks[4], ks[5], 2 * H, H)      # linear3
    p4 = lin(ks[6], ks[7], H, H)          # linear4
    p5 = lin(ks[8], ks[9], H, H)          # linear5
    return (p1, p2, p3, p4, p5)


def reference_forward(x, adj, params):
    (w1t, b1), (w2t, b2), (w3t, b3), (w4t, b4), (w5t, b5) = params
    relu = lambda v: jnp.maximum(v, 0.0)
    h = adj @ x + x
    h = relu(relu(h @ w1t + b1) @ w2t + b2)
    c = jnp.concatenate([x, h], axis=1)
    h2 = adj @ c + c
    h2 = relu(relu(h2 @ w3t + b3) @ w4t + b4)
    return relu(h2 @ w5t + b5)


if __name__ == "__main__":
    N, H = 200, 32  # 200 graph nodes (exercises padding + both code paths), hidden dim 32
    key = jax.random.PRNGKey(0)
    kx, kp = jax.random.split(key)

    x = jax.random.normal(kx, (N, H), jnp.float32)

    # Small deterministic graph: bidirectional ring over N nodes (edge_index [2, E]).
    src = jnp.concatenate([jnp.arange(N), (jnp.arange(N) + 1) % N])
    dst = jnp.concatenate([(jnp.arange(N) + 1) % N, jnp.arange(N)])
    # Dense adjacency for sum aggregation: adj[dst, src] += 1  (glue, not hot path).
    adj = jnp.zeros((N, N), jnp.float32).at[dst, src].add(1.0)

    params = make_params(kp, H)
    ref = reference_forward(x, adj, params)

    # Fused single-kernel path (graph fits in VMEM — default for this size).
    out_fused = jax.block_until_ready(gin_forward(x, adj, params))
    # Tiled two-pass path (forced, small tile so the k-reduction loop is exercised).
    out_tiled = jax.block_until_ready(gin_forward(x, adj, params, tile_n=128, force_tiled=True))

    # bf16 MXU operands / bf16 h storage vs. f32 reference: mixed-precision tolerance.
    for name, out in (("fused", out_fused), ("tiled", out_tiled)):
        assert out.shape == (N, H)
        max_err = float(jnp.max(jnp.abs(out - ref)))
        assert jnp.allclose(out, ref, atol=5e-2, rtol=5e-2), f"{name} max abs err = {max_err}"

    print("KERNEL_OK")
</pallas_src>

<mosaic_0001>
module attributes {stable_mosaic.version = 11 : i64} {
  func.func @_gin_fused_kernel(%arg0: i32, %arg1: memref<256x256xbf16, #tpu.memory_space<vmem>>, %arg2: memref<256x128xf32, #tpu.memory_space<vmem>>, %arg3: memref<128x128xbf16, #tpu.memory_space<vmem>>, %arg4: memref<1x128xf32, #tpu.memory_space<vmem>>, %arg5: memref<128x128xbf16, #tpu.memory_space<vmem>>, %arg6: memref<1x128xf32, #tpu.memory_space<vmem>>, %arg7: memref<128x128xbf16, #tpu.memory_space<vmem>>, %arg8: memref<128x128xbf16, #tpu.memory_space<vmem>>, %arg9: memref<1x128xf32, #tpu.memory_space<vmem>>, %arg10: memref<128x128xbf16, #tpu.memory_space<vmem>>, %arg11: memref<1x128xf32, #tpu.memory_space<vmem>>, %arg12: memref<128x128xbf16, #tpu.memory_space<vmem>>, %arg13: memref<1x128xf32, #tpu.memory_space<vmem>>, %arg14: memref<256x128xf32, #tpu.memory_space<vmem>>) attributes {dimension_semantics = [#tpu.dimension_semantics<arbitrary>], iteration_bounds = array<i64: 1>, scalar_prefetch = 0 : i64, scratch_operands = 0 : i64, tpu.core_type = #tpu.core_type<tc>, window_params = [{pipeline_mode = #tpu.pipeline_mode<synchronous>, transform_indices = @transform_0, window_bounds = array<i64: 256, 256>}, {pipeline_mode = #tpu.pipeline_mode<synchronous>, transform_indices = @transform_1, window_bounds = array<i64: 256, 128>}, {pipeline_mode = #tpu.pipeline_mode<synchronous>, transform_indices = @transform_2, window_bounds = array<i64: 128, 128>}, {pipeline_mode = #tpu.pipeline_mode<synchronous>, transform_indices = @transform_3, window_bounds = array<i64: 1, 128>}, {pipeline_mode = #tpu.pipeline_mode<synchronous>, transform_indices = @transform_4, window_bounds = array<i64: 128, 128>}, {pipeline_mode = #tpu.pipeline_mode<synchronous>, transform_indices = @transform_5, window_bounds = array<i64: 1, 128>}, {pipeline_mode = #tpu.pipeline_mode<synchronous>, transform_indices = @transform_6, window_bounds = array<i64: 128, 128>}, {pipeline_mode = #tpu.pipeline_mode<synchronous>, transform_indices = @transform_7, window_bounds = array<i64: 128, 128>}, {pipeline_mode = #tpu.pipeline_mode<synchronous>, transform_indices = @transform_8, window_bounds = array<i64: 1, 128>}, {pipeline_mode = #tpu.pipeline_mode<synchronous>, transform_indices = @transform_9, window_bounds = array<i64: 128, 128>}, {pipeline_mode = #tpu.pipeline_mode<synchronous>, transform_indices = @transform_10, window_bounds = array<i64: 1, 128>}, {pipeline_mode = #tpu.pipeline_mode<synchronous>, transform_indices = @transform_11, window_bounds = array<i64: 128, 128>}, {pipeline_mode = #tpu.pipeline_mode<synchronous>, transform_indices = @transform_12, window_bounds = array<i64: 1, 128>}, {pipeline_mode = #tpu.pipeline_mode<synchronous>, transform_indices = @transform_13, window_bounds = array<i64: 256, 128>}]} {
    %c0 = arith.constant 0 : index
    %c0_0 = arith.constant 0 : index
    %0 = vector.load %arg1[%c0, %c0_0] : memref<256x256xbf16, #tpu.memory_space<vmem>>, vector<256x256xbf16>
    %c0_1 = arith.constant 0 : index
    %c0_2 = arith.constant 0 : index
    %1 = vector.load %arg2[%c0_1, %c0_2] : memref<256x128xf32, #tpu.memory_space<vmem>>, vector<256x128xf32>
    %2 = arith.truncf %1 : vector<256x128xf32> to vector<256x128xbf16>
    %cst = arith.constant dense<0.000000e+00> : vector<256x128xf32>
    %3 = tpu.matmul %0, %2, %cst {dimension_numbers = #tpu.dot_dimension_numbers<[1], [0], [0], [1], [0, 0, 1, 1], [], []>} : vector<256x256xbf16>, vector<256x128xbf16>, vector<256x128xf32> -> vector<256x128xf32>
    %4 = arith.addf %3, %1 : vector<256x128xf32>
    %5 = arith.truncf %4 : vector<256x128xf32> to vector<256x128xbf16>
    %c0_3 = arith.constant 0 : index
    %c0_4 = arith.constant 0 : index
    %6 = vector.load %arg3[%c0_3, %c0_4] : memref<128x128xbf16, #tpu.memory_space<vmem>>, vector<128x128xbf16>
    %cst_5 = arith.constant dense<0.000000e+00> : vector<256x128xf32>
    %7 = tpu.matmul %5, %6, %cst_5 {dimension_numbers = #tpu.dot_dimension_numbers<[1], [0], [0], [1], [0, 0, 1, 1], [], []>} : vector<256x128xbf16>, vector<128x128xbf16>, vector<256x128xf32> -> vector<256x128xf32>
    %c0_6 = arith.constant 0 : index
    %c0_7 = arith.constant 0 : index
    %8 = vector.load %arg4[%c0_6, %c0_7] : memref<1x128xf32, #tpu.memory_space<vmem>>, vector<1x128xf32>
    %9 = vector.broadcast %8 : vector<1x128xf32> to vector<256x128xf32>
    %10 = arith.addf %7, %9 : vector<256x128xf32>
    %cst_8 = arith.constant 0.000000e+00 : f32
    %11 = vector.broadcast %cst_8 : f32 to vector<256x128xf32>
    %12 = arith.maximumf %10, %11 : vector<256x128xf32>
    %13 = arith.truncf %12 : vector<256x128xf32> to vector<256x128xbf16>
    %c0_9 = arith.constant 0 : index
    %c0_10 = arith.constant 0 : index
    %14 = vector.load %arg5[%c0_9, %c0_10] : memref<128x128xbf16, #tpu.memory_space<vmem>>, vector<128x128xbf16>
    %cst_11 = arith.constant dense<0.000000e+00> : vector<256x128xf32>
    %15 = tpu.matmul %13, %14, %cst_11 {dimension_numbers = #tpu.dot_dimension_numbers<[1], [0], [0], [1], [0, 0, 1, 1], [], []>} : vector<256x128xbf16>, vector<128x128xbf16>, vector<256x128xf32> -> vector<256x128xf32>
    %c0_12 = arith.constant 0 : index
    %c0_13 = arith.constant 0 : index
    %16 = vector.load %arg6[%c0_12, %c0_13] : memref<1x128xf32, #tpu.memory_space<vmem>>, vector<1x128xf32>
    %17 = vector.broadcast %16 : vector<1x128xf32> to vector<256x128xf32>
    %18 = arith.addf %15, %17 : vector<256x128xf32>
    %cst_14 = arith.constant 0.000000e+00 : f32
    %19 = vector.broadcast %cst_14 : f32 to vector<256x128xf32>
    %20 = arith.maximumf %18, %19 : vector<256x128xf32>
    %21 = arith.truncf %20 : vector<256x128xf32> to vector<256x128xbf16>
    %cst_15 = arith.constant dense<0.000000e+00> : vector<256x128xf32>
    %22 = tpu.matmul %0, %21, %cst_15 {dimension_numbers = #tpu.dot_dimension_numbers<[1], [0], [0], [1], [0, 0, 1, 1], [], []>} : vector<256x256xbf16>, vector<256x128xbf16>, vector<256x128xf32> -> vector<256x128xf32>
    %23 = arith.addf %22, %20 : vector<256x128xf32>
    %24 = arith.truncf %4 : vector<256x128xf32> to vector<256x128xbf16>
    %c0_16 = arith.constant 0 : index
    %c0_17 = arith.constant 0 : index
    %25 = vector.load %arg7[%c0_16, %c0_17] : memref<128x128xbf16, #tpu.memory_space<vmem>>, vector<128x128xbf16>
    %cst_18 = arith.constant dense<0.000000e+00> : vector<256x128xf32>
    %26 = tpu.matmul %24, %25, %cst_18 {dimension_numbers = #tpu.dot_dimension_numbers<[1], [0], [0], [1], [0, 0, 1, 1], [], []>} : vector<256x128xbf16>, vector<128x128xbf16>, vector<256x128xf32> -> vector<256x128xf32>
    %27 = arith.truncf %23 : vector<256x128xf32> to vector<256x128xbf16>
    %c0_19 = arith.constant 0 : index
    %c0_20 = arith.constant 0 : index
    %28 = vector.load %arg8[%c0_19, %c0_20] : memref<128x128xbf16, #tpu.memory_space<vmem>>, vector<128x128xbf16>
    %cst_21 = arith.constant dense<0.000000e+00> : vector<256x128xf32>
    %29 = tpu.matmul %27, %28, %cst_21 {dimension_numbers = #tpu.dot_dimension_numbers<[1], [0], [0], [1], [0, 0, 1, 1], [], []>} : vector<256x128xbf16>, vector<128x128xbf16>, vector<256x128xf32> -> vector<256x128xf32>
    %30 = arith.addf %26, %29 : vector<256x128xf32>
    %c0_22 = arith.constant 0 : index
    %c0_23 = arith.constant 0 : index
    %31 = vector.load %arg9[%c0_22, %c0_23] : memref<1x128xf32, #tpu.memory_space<vmem>>, vector<1x128xf32>
    %32 = vector.broadcast %31 : vector<1x128xf32> to vector<256x128xf32>
    %33 = arith.addf %30, %32 : vector<256x128xf32>
    %cst_24 = arith.constant 0.000000e+00 : f32
    %34 = vector.broadcast %cst_24 : f32 to vector<256x128xf32>
    %35 = arith.maximumf %33, %34 : vector<256x128xf32>
    %36 = arith.truncf %35 : vector<256x128xf32> to vector<256x128xbf16>
    %c0_25 = arith.constant 0 : index
    %c0_26 = arith.constant 0 : index
    %37 = vector.load %arg10[%c0_25, %c0_26] : memref<128x128xbf16, #tpu.memory_space<vmem>>, vector<128x128xbf16>
    %cst_27 = arith.constant dense<0.000000e+00> : vector<256x128xf32>
    %38 = tpu.matmul %36, %37, %cst_27 {dimension_numbers = #tpu.dot_dimension_numbers<[1], [0], [0], [1], [0, 0, 1, 1], [], []>} : vector<256x128xbf16>, vector<128x128xbf16>, vector<256x128xf32> -> vector<256x128xf32>
    %c0_28 = arith.constant 0 : index
    %c0_29 = arith.constant 0 : index
    %39 = vector.load %arg11[%c0_28, %c0_29] : memref<1x128xf32, #tpu.memory_space<vmem>>, vector<1x128xf32>
    %40 = vector.broadcast %39 : vector<1x128xf32> to vector<256x128xf32>
    %41 = arith.addf %38, %40 : vector<256x128xf32>
    %cst_30 = arith.constant 0.000000e+00 : f32
    %42 = vector.broadcast %cst_30 : f32 to vector<256x128xf32>
    %43 = arith.maximumf %41, %42 : vector<256x128xf32>
    %44 = arith.truncf %43 : vector<256x128xf32> to vector<256x128xbf16>
    %c0_31 = arith.constant 0 : index
    %c0_32 = arith.constant 0 : index
    %45 = vector.load %arg12[%c0_31, %c0_32] : memref<128x128xbf16, #tpu.memory_space<vmem>>, vector<128x128xbf16>
    %cst_33 = arith.constant dense<0.000000e+00> : vector<256x128xf32>
    %46 = tpu.matmul %44, %45, %cst_33 {dimension_numbers = #tpu.dot_dimension_numbers<[1], [0], [0], [1], [0, 0, 1, 1], [], []>} : vector<256x128xbf16>, vector<128x128xbf16>, vector<256x128xf32> -> vector<256x128xf32>
    %c0_34 = arith.constant 0 : index
    %c0_35 = arith.constant 0 : index
    %47 = vector.load %arg13[%c0_34, %c0_35] : memref<1x128xf32, #tpu.memory_space<vmem>>, vector<1x128xf32>
    %48 = vector.broadcast %47 : vector<1x128xf32> to vector<256x128xf32>
    %49 = arith.addf %46, %48 : vector<256x128xf32>
    %cst_36 = arith.constant 0.000000e+00 : f32
    %50 = vector.broadcast %cst_36 : f32 to vector<256x128xf32>
    %51 = arith.maximumf %49, %50 : vector<256x128xf32>
    %c0_37 = arith.constant 0 : index
    %c0_38 = arith.constant 0 : index
    %52 = vector.load %arg14[%c0_37, %c0_38] : memref<256x128xf32, #tpu.memory_space<vmem>>, vector<256x128xf32>
    tpu.vector_store %arg14[%c0_37, %c0_38], %51 {strides = array<i32>} : memref<256x128xf32, #tpu.memory_space<vmem>>, vector<256x128xf32>,
    return
  }
  func.func @transform_0(%arg0: i32) -> (i32, i32) {
    %c0_i32 = arith.constant 0 : i32
    %c0_i32_0 = arith.constant 0 : i32
    %c0_i32_1 = arith.constant 0 : i32
    return %c0_i32, %c0_i32_0 : i32, i32
  }
  func.func @transform_1(%arg0: i32) -> (i32, i32) {
    %c0_i32 = arith.constant 0 : i32
    %c0_i32_0 = arith.constant 0 : i32
    %c0_i32_1 = arith.constant 0 : i32
    return %c0_i32, %c0_i32_0 : i32, i32
  }
  func.func @transform_2(%arg0: i32) -> (i32, i32) {
    %c0_i32 = arith.constant 0 : i32
    %c0_i32_0 = arith.constant 0 : i32
    %c0_i32_1 = arith.constant 0 : i32
    return %c0_i32, %c0_i32_0 : i32, i32
  }
  func.func @transform_3(%arg0: i32) -> (i32, i32) {
    %c0_i32 = arith.constant 0 : i32
    %c0_i32_0 = arith.constant 0 : i32
    %c0_i32_1 = arith.constant 0 : i32
    return %c0_i32, %c0_i32_0 : i32, i32
  }
  func.func @transform_4(%arg0: i32) -> (i32, i32) {
    %c0_i32 = arith.constant 0 : i32
    %c0_i32_0 = arith.constant 0 : i32
    %c0_i32_1 = arith.constant 0 : i32
    return %c0_i32, %c0_i32_0 : i32, i32
  }
  func.func @transform_5(%arg0: i32) -> (i32, i32) {
    %c0_i32 = arith.constant 0 : i32
    %c0_i32_0 = arith.constant 0 : i32
    %c0_i32_1 = arith.constant 0 : i32
    return %c0_i32, %c0_i32_0 : i32, i32
  }
  func.func @transform_6(%arg0: i32) -> (i32, i32) {
    %c0_i32 = arith.constant 0 : i32
    %c0_i32_0 = arith.constant 0 : i32
    %c0_i32_1 = arith.constant 0 : i32
    return %c0_i32, %c0_i32_0 : i32, i32
  }
  func.func @transform_7(%arg0: i32) -> (i32, i32) {
    %c0_i32 = arith.constant 0 : i32
    %c0_i32_0 = arith.constant 0 : i32
    %c0_i32_1 = arith.constant 0 : i32
    return %c0_i32, %c0_i32_0 : i32, i32
  }
  func.func @transform_8(%arg0: i32) -> (i32, i32) {
    %c0_i32 = arith.constant 0 : i32
    %c0_i32_0 = arith.constant 0 : i32
    %c0_i32_1 = arith.constant 0 : i32
    return %c0_i32, %c0_i32_0 : i32, i32
  }
  func.func @transform_9(%arg0: i32) -> (i32, i32) {
    %c0_i32 = arith.constant 0 : i32
    %c0_i32_0 = arith.constant 0 : i32
    %c0_i32_1 = arith.constant 0 : i32
    return %c0_i32, %c0_i32_0 : i32, i32
  }
  func.func @transform_10(%arg0: i32) -> (i32, i32) {
    %c0_i32 = arith.constant 0 : i32
    %c0_i32_0 = arith.constant 0 : i32
    %c0_i32_1 = arith.constant 0 : i32
    return %c0_i32, %c0_i32_0 : i32, i32
  }
  func.func @transform_11(%arg0: i32) -> (i32, i32) {
    %c0_i32 = arith.constant 0 : i32
    %c0_i32_0 = arith.constant 0 : i32
    %c0_i32_1 = arith.constant 0 : i32
    return %c0_i32, %c0_i32_0 : i32, i32
  }
  func.func @transform_12(%arg0: i32) -> (i32, i32) {
    %c0_i32 = arith.constant 0 : i32
    %c0_i32_0 = arith.constant 0 : i32
    %c0_i32_1 = arith.constant 0 : i32
    return %c0_i32, %c0_i32_0 : i32, i32
  }
  func.func @transform_13(%arg0: i32) -> (i32, i32) {
    %c0_i32 = arith.constant 0 : i32
    %c0_i32_0 = arith.constant 0 : i32
    %c0_i32_1 = arith.constant 0 : i32
    return %c0_i32, %c0_i32_0 : i32, i32
  }
}

</mosaic_0001>

<llo_original>
// kernel: tpu_custom_call.1
$region0: #{tpu_custom_call.1}
  #allocation0 [shape = 'u32[]', space=smem, size = 0x4, offset = 0x4, fixed_abs, tag = 'smem constant byte address 0x4 - core index']
  #allocation1 [shape = 'u32[144,128]{1,0:T(1,128)}', space=vmem, size = 0x12000, scoped, tag = 'internal scratch']
  %s0 = inlined_call_operand.hbm [shape: bf16[256,256], index: 0, kind: input, shape index: {}]
  %s1 = inlined_call_operand.hbm [shape: f32[256,128], index: 1, kind: input, shape index: {}]
  %s2 = inlined_call_operand.hbm [shape: bf16[128,128], index: 2, kind: input, shape index: {}]
  %s3 = inlined_call_operand.vmem [shape: f32[1,128], index: 3, kind: input, shape index: {}]
  %s4 = inlined_call_operand.hbm [shape: bf16[128,128], index: 4, kind: input, shape index: {}]
  %s5 = inlined_call_operand.vmem [shape: f32[1,128], index: 5, kind: input, shape index: {}]
  %s6 = inlined_call_operand.hbm [shape: bf16[128,128], index: 6, kind: input, shape index: {}]
  %s7 = inlined_call_operand.hbm [shape: bf16[128,128], index: 7, kind: input, shape index: {}]
  %s8 = inlined_call_operand.vmem [shape: f32[1,128], index: 8, kind: input, shape index: {}]
  %s9 = inlined_call_operand.hbm [shape: bf16[128,128], index: 9, kind: input, shape index: {}]
  %s10 = inlined_call_operand.vmem [shape: f32[1,128], index: 10, kind: input, shape index: {}]
  %s11 = inlined_call_operand.hbm [shape: bf16[128,128], index: 11, kind: input, shape index: {}]
  %s12 = inlined_call_operand.vmem [shape: f32[1,128], index: 12, kind: input, shape index: {}]
  %s13 = inlined_call_operand.hbm [shape: f32[256,128], index: 13, kind: output, shape index: {}]
  %s14 = sld [smem:[#allocation0]]
  $region94: #{tpu_custom_call.1} parent=0
    _
  %s16 = ssub.s32 1, %s14
  %s17 = scalar_select 0, %s16, %s14
  $region1: #{tpu_custom_call.1} parent=0
    #allocation2 [shape = 'u8[131072]{0}', space=vmem, size = 0x20000, scoped, tag = 'input window, operand 0, single buffered']
    #allocation3 [shape = 's32[1]{0}', space=sflag, size = 0x4, scoped, tag = 'scoped memory for tpu_custom_call.1']
    #allocation4 [shape = 's32[1]{0}', space=sflag, size = 0x4, scoped, tag = 'scoped memory for tpu_custom_call.1']
    #allocation5 [shape = 'u8[131072]{0}', space=vmem, size = 0x20000, scoped, tag = 'input window, operand 1, single buffered']
    #allocation6 [shape = 's32[1]{0}', space=sflag, size = 0x4, scoped, tag = 'scoped memory for tpu_custom_call.1']
    #allocation7 [shape = 'u8[32768]{0}', space=vmem, size = 0x8000, scoped, tag = 'input window, operand 2, single buffered']
    #allocation8 [shape = 'u8[32768]{0}', space=vmem, size = 0x8000, scoped, tag = 'input window, operand 4, single buffered']
    #allocation9 [shape = 's32[1]{0}', space=sflag, size = 0x4, scoped, tag = 'scoped memory for tpu_custom_call.1']
    #allocation10 [shape = 'u8[32768]{0}', space=vmem, size = 0x8000, scoped, tag = 'input window, operand 6, single buffered']
    #allocation11 [shape = 'u8[32768]{0}', space=vmem, size = 0x8000, scoped, tag = 'input window, operand 7, single buffered']
    #allocation12 [shape = 's32[1]{0}', space=sflag, size = 0x4, scoped, tag = 'scoped memory for tpu_custom_call.1']
    #allocation13 [shape = 'u8[32768]{0}', space=vmem, size = 0x8000, scoped, tag = 'input window, operand 9, single buffered']
    #allocation14 [shape = 'u8[32768]{0}', space=vmem, size = 0x8000, scoped, tag = 'input window, operand 11, single buffered']
    #allocation15 [shape = 's32[1]{0}', space=sflag, size = 0x4, scoped, tag = 'scoped memory for tpu_custom_call.1']
    #allocation16 [shape = 'u8[131072]{0}', space=vmem, size = 0x20000, scoped, tag = 'output window, operand 0, single buffered']
    %18 = vsyncpa [#allocation3], 0
    %19 = vsyncpa [#allocation6], 0
    %20 = vsyncpa [#allocation9], 0
    %21 = vsyncpa [#allocation12], 0
    %22 = vsyncpa [#allocation15], 0
    %23 = vsyncpa [#allocation4], 0
    // Predicated region
    $region2: #{tpu_custom_call.1} parent=1 // pred_check
      _
    $region3: #{tpu_custom_call.1} parent=1 // pred_check_branch
      %25 = sbr.rel (0) target = $region5
    $region4: #{tpu_custom_call.1} parent=1 // pred_region
      %s27 = ssub.s32 4096, 4096
      %28 = vsyncadd [#allocation3], %s27
      %s29 = sshll.u32 [#allocation2], 4
      %s30 = int_to_ptr.vmem [resolvable:$true] %s29
      %35 = dma.hbm_to_vmem [thread:$0]  %s0, 4096, %s30, [#allocation3], 128, 128, 8
    $region5: #{tpu_custom_call.1} parent=1 // pred_fallthru
      _
    // Predicated region
    $region6: #{tpu_custom_call.1} parent=1 // pred_check
      _
    $region7: #{tpu_custom_call.1} parent=1 // pred_check_branch
      %37 = sbr.rel (0) target = $region9
    $region8: #{tpu_custom_call.1} parent=1 // pred_region
      %s39 = ssub.s32 4096, 4096
      %40 = vsyncadd [#allocation6], %s39
      %s41 = sshll.u32 [#allocation5], 4
      %s42 = int_to_ptr.vmem [resolvable:$true] %s41
      %47 = dma.hbm_to_vmem [thread:$0]  %s1, 4096, %s42, [#allocation6], 128, 128, 8
    $region9: #{tpu_custom_call.1} parent=1 // pred_fallthru
      _
    // Predicated region
    $region10: #{tpu_custom_call.1} parent=1 // pred_check
      _
    $region11: #{tpu_custom_call.1} parent=1 // pred_check_branch
      %49 = sbr.rel (0) target = $region13
    $region12: #{tpu_custom_call.1} parent=1 // pred_region
      %s51 = ssub.s32 1024, 1024
      %52 = vsyncadd [#allocation6], %s51
      %s53 = sshll.u32 [#allocation7], 4
      %s54 = int_to_ptr.vmem [resolvable:$true] %s53
      %59 = dma.hbm_to_vmem [thread:$0]  %s2, 1024, %s54, [#allocation6], 64, 64, 4
    $region13: #{tpu_custom_call.1} parent=1 // pred_fallthru
      _
    // Predicated region
    $region14: #{tpu_custom_call.1} parent=1 // pred_check
      _
    $region15: #{tpu_custom_call.1} parent=1 // pred_check_branch
      %61 = sbr.rel (0) target = $region17
    $region16: #{tpu_custom_call.1} parent=1 // pred_region
      _
    $region17: #{tpu_custom_call.1} parent=1 // pred_fallthru
      _
    // Predicated region
    $region18: #{tpu_custom_call.1} parent=1 // pred_check
      _
    $region19: #{tpu_custom_call.1} parent=1 // pred_check_branch
      %63 = sbr.rel (0) target = $region21
    $region20: #{tpu_custom_call.1} parent=1 // pred_region
      %s65 = ssub.s32 1024, 1024
      %66 = vsyncadd [#allocation9], %s65
      %s67 = sshll.u32 [#allocation8], 4
      %s68 = int_to_ptr.vmem [resolvable:$true] %s67
      %73 = dma.hbm_to_vmem [thread:$0]  %s4, 1024, %s68, [#allocation9], 64, 64, 4
    $region21: #{tpu_custom_call.1} parent=1 // pred_fallthru
      _
    // Predicated region
    $region22: #{tpu_custom_call.1} parent=1 // pred_check
      _
    $region23: #{tpu_custom_call.1} parent=1 // pred_check_branch
      %75 = sbr.rel (0) target = $region25
    $region24: #{tpu_custom_call.1} parent=1 // pred_region
      _
    $region25: #{tpu_custom_call.1} parent=1 // pred_fallthru
      _
    // Predicated region
    $region26: #{tpu_custom_call.1} parent=1 // pred_check
      _
    $region27: #{tpu_custom_call.1} parent=1 // pred_check_branch
      %77 = sbr.rel (0) target = $region29
    $region28: #{tpu_custom_call.1} parent=1 // pred_region
      %s79 = ssub.s32 1024, 1024
      %80 = vsyncadd [#allocation9], %s79
      %s81 = sshll.u32 [#allocation10], 4
      %s82 = int_to_ptr.vmem [resolvable:$true] %s81
      %87 = dma.hbm_to_vmem [thread:$0]  %s6, 1024, %s82, [#allocation9], 64, 64, 4
    $region29: #{tpu_custom_call.1} parent=1 // pred_fallthru
      _
    // Predicated region
    $region30: #{tpu_custom_call.1} parent=1 // pred_check
      _
    $region31: #{tpu_custom_call.1} parent=1 // pred_check_branch
      %89 = sbr.rel (0) target = $region33
    $region32: #{tpu_custom_call.1} parent=1 // pred_region
      %s91 = ssub.s32 1024, 1024
      %92 = vsyncadd [#allocation12], %s91
      %s93 = sshll.u32 [#allocation11], 4
      %s94 = int_to_ptr.vmem [resolvable:$true] %s93
      %99 = dma.hbm_to_vmem [thread:$0]  %s7, 1024, %s94, [#allocation12], 64, 64, 4
    $region33: #{tpu_custom_call.1} parent=1 // pred_fallthru
      _
    // Predicated region
    $region34: #{tpu_custom_call.1} parent=1 // pred_check
      _
    $region35: #{tpu_custom_call.1} parent=1 // pred_check_branch
      %101 = sbr.rel (0) target = $region37
    $region36: #{tpu_custom_call.1} parent=1 // pred_region
      _
    $region37: #{tpu_custom_call.1} parent=1 // pred_fallthru
      _
    // Predicated region
    $region38: #{tpu_custom_call.1} parent=1 // pred_check
      _
    $region39: #{tpu_custom_call.1} parent=1 // pred_check_branch
      %103 = sbr.rel (0) target = $region41
    $region40: #{tpu_custom_call.1} parent=1 // pred_region
      %s105 = ssub.s32 1024, 1024
      %106 = vsyncadd [#allocation12], %s105
      %s107 = sshll.u32 [#allocation13], 4
      %s108 = int_to_ptr.vmem [resolvable:$true] %s107
      %113 = dma.hbm_to_vmem [thread:$0]  %s9, 1024, %s108, [#allocation12], 64, 64, 4
    $region41: #{tpu_custom_call.1} parent=1 // pred_fallthru
      _
    // Predicated region
    $region42: #{tpu_custom_call.1} parent=1 // pred_check
      _
    $region43: #{tpu_custom_call.1} parent=1 // pred_check_branch
      %115 = sbr.rel (0) target = $region45
    $region44: #{tpu_custom_call.1} parent=1 // pred_region
      _
    $region45: #{tpu_custom_call.1} parent=1 // pred_fallthru
      _
    // Predicated region
    $region46: #{tpu_custom_call.1} parent=1 // pred_check
      _
    $region47: #{tpu_custom_call.1} parent=1 // pred_check_branch
      %117 = sbr.rel (0) target = $region49
    $region48: #{tpu_custom_call.1} parent=1 // pred_region
      %s119 = ssub.s32 1024, 1024
      %120 = vsyncadd [#allocation15], %s119
      %s121 = sshll.u32 [#allocation14], 4
      %s122 = int_to_ptr.vmem [resolvable:$true] %s121
      %127 = dma.hbm_to_vmem [thread:$0]  %s11, 1024, %s122, [#allocation15], 64, 64, 4
    $region49: #{tpu_custom_call.1} parent=1 // pred_fallthru
      _
    // Predicated region
    $region50: #{tpu_custom_call.1} parent=1 // pred_check
      _
    $region51: #{tpu_custom_call.1} parent=1 // pred_check_branch
      %129 = sbr.rel (0) target = $region53
    $region52: #{tpu_custom_call.1} parent=1 // pred_region
      _
    $region53: #{tpu_custom_call.1} parent=1 // pred_fallthru
      _
    // Predicated region
    $region54: #{tpu_custom_call.1} parent=1 // pred_check
      _
    $region55: #{tpu_custom_call.1} parent=1 // pred_check_branch
      %131 = sbr.rel (0) target = $region57
    $region56: #{tpu_custom_call.1} parent=1 // pred_region
      %132 = dma.done [#allocation3], 4096
    $region57: #{tpu_custom_call.1} parent=1 // pred_fallthru
      _
    // Predicated region
    $region58: #{tpu_custom_call.1} parent=1 // pred_check
      _
    $region59: #{tpu_custom_call.1} parent=1 // pred_check_branch
      %134 = sbr.rel (0) target = $region61
    $region60: #{tpu_custom_call.1} parent=1 // pred_region
      %135 = dma.done [#allocation6], 4096
    $region61: #{tpu_custom_call.1} parent=1 // pred_fallthru
      _
    // Predicated region
    $region62: #{tpu_custom_call.1} parent=1 // pred_check
      _
    $region63: #{tpu_custom_call.1} parent=1 // pred_check_branch
      %137 = sbr.rel (0) target = $region65
    $region64: #{tpu_custom_call.1} parent=1 // pred_region
      %138 = dma.done [#allocation6], 1024
    $region65: #{tpu_custom_call.1} parent=1 // pred_fallthru
      _
    // Predicated region
    $region66: #{tpu_custom_call.1} parent=1 // pred_check
      _
    $region67: #{tpu_custom_call.1} parent=1 // pred_check_branch
      %140 = sbr.rel (0) target = $region69
    $region68: #{tpu_custom_call.1} parent=1 // pred_region
      %141 = dma.done [#allocation9], 1024
    $region69: #{tpu_custom_call.1} parent=1 // pred_fallthru
      _
    // Predicated region
    $region70: #{tpu_custom_call.1} parent=1 // pred_check
      _
    $region71: #{tpu_custom_call.1} parent=1 // pred_check_branch
      %143 = sbr.rel (0) target = $region73
    $region72: #{tpu_custom_call.1} parent=1 // pred_region
      %144 = dma.done [#allocation9], 1024
    $region73: #{tpu_custom_call.1} parent=1 // pred_fallthru
      _
    // Predicated region
    $region74: #{tpu_custom_call.1} parent=1 // pred_check
      _
    $region75: #{tpu_custom_call.1} parent=1 // pred_check_branch
      %146 = sbr.rel (0) target = $region77
    $region76: #{tpu_custom_call.1} parent=1 // pred_region
      %147 = dma.done [#allocation12], 1024
    $region77: #{tpu_custom_call.1} parent=1 // pred_fallthru
      _
    // Predicated region
    $region78: #{tpu_custom_call.1} parent=1 // pred_check
      _
    $region79: #{tpu_custom_call.1} parent=1 // pred_check_branch
      %149 = sbr.rel (0) target = $region81
    $region80: #{tpu_custom_call.1} parent=1 // pred_region
      %150 = dma.done [#allocation12], 1024
    $region81: #{tpu_custom_call.1} parent=1 // pred_fallthru
      _
    // Predicated region
    $region82: #{tpu_custom_call.1} parent=1 // pred_check
      _
    $region83: #{tpu_custom_call.1} parent=1 // pred_check_branch
      %152 = sbr.rel (0) target = $region85
    $region84: #{tpu_custom_call.1} parent=1 // pred_region
      %153 = dma.done [#allocation15], 1024
    $region85: #{tpu_custom_call.1} parent=1 // pred_fallthru
      _
    %v155 = vld [vmem:[#allocation2] sm:$0xff]
    %v156 = vld [vmem:[#allocation2 + $0x8] sm:$0xff]
    %v157 = vld [vmem:[#allocation2 + $0x10] sm:$0xff]
    %v158 = vld [vmem:[#allocation2 + $0x18] sm:$0xff]
    %v159 = vld [vmem:[#allocation2 + $0x20] sm:$0xff]
    %v160 = vld [vmem:[#allocation2 + $0x28] sm:$0xff]
    %v161 = vld [vmem:[#allocation2 + $0x30] sm:$0xff]
    %v162 = vld [vmem:[#allocation2 + $0x38] sm:$0xff]
    %v163 = vld [vmem:[#allocation2 + $0x40] sm:$0xff]
    %v164 = vld [vmem:[#allocation2 + $0x48] sm:$0xff]
    %v165 = vld [vmem:[#allocation2 + $0x50] sm:$0xff]
    %v166 = vld [vmem:[#allocation2 + $0x58] sm:$0xff]
    %v167 = vld [vmem:[#allocation2 + $0x60] sm:$0xff]
    %v168 = vld [vmem:[#allocation2 + $0x68] sm:$0xff]
    %v169 = vld [vmem:[#allocation2 + $0x70] sm:$0xff]
    %v170 = vld [vmem:[#allocation2 + $0x78] sm:$0xff]
    %v171 = vld [vmem:[#allocation2 + $0x80] sm:$0xff]
    %v172 = vld [vmem:[#allocation2 + $0x88] sm:$0xff]
    %v173 = vld [vmem:[#allocation2 + $0x90] sm:$0xff]
    %v174 = vld [vmem:[#allocation2 + $0x98] sm:$0xff]
    %v175 = vld [vmem:[#allocation2 + $0xa0] sm:$0xff]
    %v176 = vld [vmem:[#allocation2 + $0xa8] sm:$0xff]
    %v177 = vld [vmem:[#allocation2 + $0xb0] sm:$0xff]
    %v178 = vld [vmem:[#allocation2 + $0xb8] sm:$0xff]
    %v179 = vld [vmem:[#allocation2 + $0xc0] sm:$0xff]
    %v180 = vld [vmem:[#allocation2 + $0xc8] sm:$0xff]
    %v181 = vld [vmem:[#allocation2 + $0xd0] sm:$0xff]
    %v182 = vld [vmem:[#allocation2 + $0xd8] sm:$0xff]
    %v183 = vld [vmem:[#allocation2 + $0xe0] sm:$0xff]
    %v184 = vld [vmem:[#allocation2 + $0xe8] sm:$0xff]
    %v185 = vld [vmem:[#allocation2 + $0xf0] sm:$0xff]
    %v186 = vld [vmem:[#allocation2 + $0xf8] sm:$0xff]
    %v187 = vld [vmem:[#allocation5] sm:$0xff]
    %v188 = vld [vmem:[#allocation5 + $0x8] sm:$0xff]
    %v189 = vld [vmem:[#allocation5 + $0x10] sm:$0xff]
    %v190 = vld [vmem:[#allocation5 + $0x18] sm:$0xff]
    %v191 = vld [vmem:[#allocation5 + $0x20] sm:$0xff]
    %v192 = vld [vmem:[#allocation5 + $0x28] sm:$0xff]
    %v193 = vld [vmem:[#allocation5 + $0x30] sm:$0xff]
    %v194 = vld [vmem:[#allocation5 + $0x38] sm:$0xff]
    %v195 = vld [vmem:[#allocation5 + $0x40] sm:$0xff]
    %v196 = vld [vmem:[#allocation5 + $0x48] sm:$0xff]
    %v197 = vld [vmem:[#allocation5 + $0x50] sm:$0xff]
    %v198 = vld [vmem:[#allocation5 + $0x58] sm:$0xff]
    %v199 = vld [vmem:[#allocation5 + $0x60] sm:$0xff]
    %v200 = vld [vmem:[#allocation5 + $0x68] sm:$0xff]
    %v201 = vld [vmem:[#allocation5 + $0x70] sm:$0xff]
    %v202 = vld [vmem:[#allocation5 + $0x78] sm:$0xff]
    %v203 = vld [vmem:[#allocation5 + $0x80] sm:$0xff]
    %v204 = vld [vmem:[#allocation5 + $0x88] sm:$0xff]
    %v205 = vld [vmem:[#allocation5 + $0x90] sm:$0xff]
    %v206 = vld [vmem:[#allocation5 + $0x98] sm:$0xff]
    %v207 = vld [vmem:[#allocation5 + $0xa0] sm:$0xff]
    %v208 = vld [vmem:[#allocation5 + $0xa8] sm:$0xff]
    %v209 = vld [vmem:[#allocation5 + $0xb0] sm:$0xff]
    %v210 = vld [vmem:[#allocation5 + $0xb8] sm:$0xff]
    %v211 = vld [vmem:[#allocation5 + $0xc0] sm:$0xff]
    %v212 = vld [vmem:[#allocation5 + $0xc8] sm:$0xff]
    %v213 = vld [vmem:[#allocation5 + $0xd0] sm:$0xff]
    %v214 = vld [vmem:[#allocation5 + $0xd8] sm:$0xff]
    %v215 = vld [vmem:[#allocation5 + $0xe0] sm:$0xff]
    %v216 = vld [vmem:[#allocation5 + $0xe8] sm:$0xff]
    %v217 = vld [vmem:[#allocation5 + $0xf0] sm:$0xff]
    %v218 = vld [vmem:[#allocation5 + $0xf8] sm:$0xff]
    %v219 = vpack.c.bf16 %v188, %v187
    %v220 = vpack.c.bf16 %v190, %v189
    %v221 = vpack.c.bf16 %v192, %v191
    %v222 = vpack.c.bf16 %v194, %v193
    %v223 = vpack.c.bf16 %v196, %v195
    %v224 = vpack.c.bf16 %v198, %v197
    %v225 = vpack.c.bf16 %v200, %v199
    %v226 = vpack.c.bf16 %v202, %v201
    %v227 = vpack.c.bf16 %v204, %v203
    %v228 = vpack.c.bf16 %v206, %v205
    %v229 = vpack.c.bf16 %v208, %v207
    %v230 = vpack.c.bf16 %v210, %v209
    %v231 = vpack.c.bf16 %v212, %v211
    %v232 = vpack.c.bf16 %v214, %v213
    %v233 = vpack.c.bf16 %v216, %v215
    %v234 = vpack.c.bf16 %v218, %v217
    %v267 = vunpack.c.l.b16 %v155
    %v268 = vunpack.c.h.b16 %v155
    %v269 = vunpack.c.l.b16 %v156
    %v270 = vunpack.c.h.b16 %v156
    %v271 = vunpack.c.l.b16 %v157
    %v272 = vunpack.c.h.b16 %v157
    %v273 = vunpack.c.l.b16 %v158
    %v274 = vunpack.c.h.b16 %v158
    %v275 = vunpack.c.l.b16 %v159
    %v276 = vunpack.c.h.b16 %v159
    %v277 = vunpack.c.l.b16 %v160
    %v278 = vunpack.c.h.b16 %v160
    %v279 = vunpack.c.l.b16 %v161
    %v280 = vunpack.c.h.b16 %v161
    %v281 = vunpack.c.l.b16 %v162
    %v282 = vunpack.c.h.b16 %v162
    %v283 = vunpack.c.l.b16 %v163
    %v284 = vunpack.c.h.b16 %v163
    %v285 = vunpack.c.l.b16 %v164
    %v286 = vunpack.c.h.b16 %v164
    %v287 = vunpack.c.l.b16 %v165
    %v288 = vunpack.c.h.b16 %v165
    %v289 = vunpack.c.l.b16 %v166
    %v290 = vunpack.c.h.b16 %v166
    %v291 = vunpack.c.l.b16 %v167
    %v292 = vunpack.c.h.b16 %v167
    %v293 = vunpack.c.l.b16 %v168
    %v294 = vunpack.c.h.b16 %v168
    %v295 = vunpack.c.l.b16 %v169
    %v296 = vunpack.c.h.b16 %v169
    %v297 = vunpack.c.l.b16 %v170
    %v298 = vunpack.c.h.b16 %v170
    %v299 = vunpack.c.l.b16 %v171
    %v300 = vunpack.c.h.b16 %v171
    %v301 = vunpack.c.l.b16 %v172
    %v302 = vunpack.c.h.b16 %v172
    %v303 = vunpack.c.l.b16 %v173
    %v304 = vunpack.c.h.b16 %v173
    %v305 = vunpack.c.l.b16 %v174
    %v306 = vunpack.c.h.b16 %v174
    %v307 = vunpack.c.l.b16 %v175
    %v308 = vunpack.c.h.b16 %v175
    %v309 = vunpack.c.l.b16 %v176
    %v310 = vunpack.c.h.b16 %v176
    %v311 = vunpack.c.l.b16 %v177
    %v312 = vunpack.c.h.b16 %v177
    %v313 = vunpack.c.l.b16 %v178
    %v314 = vunpack.c.h.b16 %v178
    %v315 = vunpack.c.l.b16 %v179
    %v316 = vunpack.c.h.b16 %v179
    %v317 = vunpack.c.l.b16 %v180
    %v318 = vunpack.c.h.b16 %v180
    %v319 = vunpack.c.l.b16 %v181
    %v320 = vunpack.c.h.b16 %v181
    %v321 = vunpack.c.l.b16 %v182
    %v322 = vunpack.c.h.b16 %v182
    %v323 = vunpack.c.l.b16 %v183
    %v324 = vunpack.c.h.b16 %v183
    %v325 = vunpack.c.l.b16 %v184
    %v326 = vunpack.c.h.b16 %v184
    %v327 = vunpack.c.l.b16 %v185
    %v328 = vunpack.c.h.b16 %v185
    %v329 = vunpack.c.l.b16 %v186
    %v330 = vunpack.c.h.b16 %v186
    %v331 = vpack.c.b16 %v269, %v267
    %v332 = vpack.c.b16 %v270, %v268
    %v333 = vpack.c.b16 %v273, %v271
    %v334 = vpack.c.b16 %v274, %v272
    %v335 = vpack.c.b16 %v277, %v275
    %v336 = vpack.c.b16 %v278, %v276
    %v337 = vpack.c.b16 %v281, %v279
    %v338 = vpack.c.b16 %v282, %v280
    %v339 = vpack.c.b16 %v285, %v283
    %v340 = vpack.c.b16 %v286, %v284
    %v341 = vpack.c.b16 %v289, %v287
    %v342 = vpack.c.b16 %v290, %v288
    %v343 = vpack.c.b16 %v293, %v291
    %v344 = vpack.c.b16 %v294, %v292
    %v345 = vpack.c.b16 %v297, %v295
    %v346 = vpack.c.b16 %v298, %v296
    %v347 = vpack.c.b16 %v301, %v299
    %v348 = vpack.c.b16 %v302, %v300
    %v349 = vpack.c.b16 %v305, %v303
    %v350 = vpack.c.b16 %v306, %v304
    %v351 = vpack.c.b16 %v309, %v307
    %v352 = vpack.c.b16 %v310, %v308
    %v353 = vpack.c.b16 %v313, %v311
    %v354 = vpack.c.b16 %v314, %v312
    %v355 = vpack.c.b16 %v317, %v315
    %v356 = vpack.c.b16 %v318, %v316
    %v357 = vpack.c.b16 %v321, %v319
    %v358 = vpack.c.b16 %v322, %v320
    %v359 = vpack.c.b16 %v325, %v323
    %v360 = vpack.c.b16 %v326, %v324
    %v361 = vpack.c.b16 %v329, %v327
    %v362 = vpack.c.b16 %v330, %v328
    %395 = vmatprep.subr.bf16.mxu0 0
    %396 = vmatpush1.bf16.msra.mxu0 %v226
    %397 = vmatprep.subr.bf16.mxu0 0
    %398 = vmatpush1.bf16.msra.mxu0 %v225
    %399 = vmatprep.subr.bf16.mxu0 0
    %400 = vmatpush1.bf16.msra.mxu0 %v224
    %401 = vmatprep.subr.bf16.mxu0 0
    %402 = vmatpush1.bf16.msra.mxu0 %v223
    %403 = vmatprep.subr.bf16.mxu0 0
    %404 = vmatpush1.bf16.msra.mxu0 %v222
    %405 = vmatprep.subr.bf16.mxu0 0
    %406 = vmatpush1.bf16.msra.mxu0 %v221
    %407 = vmatprep.subr.bf16.mxu0 0
    %408 = vmatpush1.bf16.msra.mxu0 %v220
    %409 = vmatprep.subr.bf16.mxu0 0
    %410 = vmatpush1.bf16.msra.mxu0 %v219
    %411 = vmatprep.subr.bf16.mxu0 0
    %412 = vmatpush2.bf16.msra.mxu0 %v234
    %413 = vmatprep.subr.bf16.mxu0 0
    %414 = vmatpush2.bf16.msra.mxu0 %v233
    %415 = vmatprep.subr.bf16.mxu0 0
    %416 = vmatpush2.bf16.msra.mxu0 %v232
    %417 = vmatprep.subr.bf16.mxu0 0
    %418 = vmatpush2.bf16.msra.mxu0 %v231
    %419 = vmatprep.subr.bf16.mxu0 0
    %420 = vmatpush2.bf16.msra.mxu0 %v230
    %421 = vmatprep.subr.bf16.mxu0 0
    %422 = vmatpush2.bf16.msra.mxu0 %v229
    %423 = vmatprep.subr.bf16.mxu0 0
    %424 = vmatpush2.bf16.msra.mxu0 %v228
    %425 = vmatprep.subr.bf16.mxu0 0
    %426 = vmatpush2.bf16.msra.mxu0 %v227
    %427 = vmatprep.mubr.bf16.mxu0 %v332
    %428 = vmatmul.mubr.bf16.gmra.mxu0 %v331
    %v429 = vpop.f32.mrf.mxu0
    %v430 = vadd.f32 %v187, %v429
    %v431 = vpop.f32.mrf.mxu0
    %v432 = vpop.f32.mrf.mxu0
    %v433 = vadd.f32 %v188, %v432
    %v434 = vpop.f32.mrf.mxu0
    %435 = vmatprep.mubr.bf16.mxu0 %v334
    %436 = vmatmul.mubr.bf16.gmra.mxu0 %v333
    %v437 = vpop.f32.mrf.mxu0
    %v438 = vadd.f32 %v189, %v437
    %v439 = vpop.f32.mrf.mxu0
    %v440 = vpop.f32.mrf.mxu0
    %v441 = vadd.f32 %v190, %v440
    %v442 = vpop.f32.mrf.mxu0
    %443 = vmatprep.mubr.bf16.mxu0 %v336
    %444 = vmatmul.mubr.bf16.gmra.mxu0 %v335
    %v445 = vpop.f32.mrf.mxu0
    %v446 = vadd.f32 %v191, %v445
    %v447 = vpop.f32.mrf.mxu0
    %v448 = vpop.f32.mrf.mxu0
    %v449 = vadd.f32 %v192, %v448
    %v450 = vpop.f32.mrf.mxu0
    %451 = vmatprep.mubr.bf16.mxu0 %v338
    %452 = vmatmul.mubr.bf16.gmra.mxu0 %v337
    %v453 = vpop.f32.mrf.mxu0
    %v454 = vadd.f32 %v193, %v453
    %v455 = vpop.f32.mrf.mxu0
    %v456 = vpop.f32.mrf.mxu0
    %v457 = vadd.f32 %v194, %v456
    %v458 = vpop.f32.mrf.mxu0
    %459 = vmatprep.mubr.bf16.mxu0 %v340
    %460 = vmatmul.mubr.bf16.gmra.mxu0 %v339
    %v461 = vpop.f32.mrf.mxu0
    %v462 = vadd.f32 %v195, %v461
    %v463 = vpop.f32.mrf.mxu0
    %v464 = vpop.f32.mrf.mxu0
    %v465 = vadd.f32 %v196, %v464
    %v466 = vpop.f32.mrf.mxu0
    %467 = vmatprep.mubr.bf16.mxu0 %v342
    %468 = vmatmul.mubr.bf16.gmra.mxu0 %v341
    %v469 = vpop.f32.mrf.mxu0
    %v470 = vadd.f32 %v197, %v469
    %v471 = vpop.f32.mrf.mxu0
    %v472 = vpop.f32.mrf.mxu0
    %v473 = vadd.f32 %v198, %v472
    %v474 = vpop.f32.mrf.mxu0
    %475 = vmatprep.mubr.bf16.mxu0 %v344
    %476 = vmatmul.mubr.bf16.gmra.mxu0 %v343
    %v477 = vpop.f32.mrf.mxu0
    %v478 = vadd.f32 %v199, %v477
    %v479 = vpop.f32.mrf.mxu0
    %v480 = vpop.f32.mrf.mxu0
    %v481 = vadd.f32 %v200, %v480
    %v482 = vpop.f32.mrf.mxu0
    %483 = vmatprep.mubr.bf16.mxu0 %v346
    %484 = vmatmul.mubr.bf16.gmra.mxu0 %v345
    %v485 = vpop.f32.mrf.mxu0
    %v486 = vadd.f32 %v201, %v485
    %v487 = vpop.f32.mrf.mxu0
    %v488 = vpop.f32.mrf.mxu0
    %v489 = vadd.f32 %v202, %v488
    %v490 = vpop.f32.mrf.mxu0
    %491 = vmatprep.mubr.bf16.mxu0 %v348
    %492 = vmatmul.mubr.bf16.gmra.mxu0 %v347
    %v493 = vpop.f32.mrf.mxu0
    %v494 = vadd.f32 %v203, %v493
    %v495 = vpop.f32.mrf.mxu0
    %v496 = vpop.f32.mrf.mxu0
    %v497 = vadd.f32 %v204, %v496
    %v498 = vpop.f32.mrf.mxu0
    %499 = vmatprep.mubr.bf16.mxu0 %v350
    %500 = vmatmul.mubr.bf16.gmra.mxu0 %v349
    %v501 = vpop.f32.mrf.mxu0
    %v502 = vadd.f32 %v205, %v501
    %v503 = vpop.f32.mrf.mxu0
    %v504 = vpop.f32.mrf.mxu0
    %v505 = vadd.f32 %v206, %v504
    %v506 = vpop.f32.mrf.mxu0
    %507 = vmatprep.mubr.bf16.mxu0 %v352
    %508 = vmatmul.mubr.bf16.gmra.mxu0 %v351
    %v509 = vpop.f32.mrf.mxu0
    %v510 = vadd.f32 %v207, %v509
    %v511 = vpop.f32.mrf.mxu0
    %v512 = vpop.f32.mrf.mxu0
    %v513 = vadd.f32 %v208, %v512
    %v514 = vpop.f32.mrf.mxu0
    %515 = vmatprep.mubr.bf16.mxu0 %v354
    %516 = vmatmul.mubr.bf16.gmra.mxu0 %v353
    %v517 = vpop.f32.mrf.mxu0
    %v518 = vadd.f32 %v209, %v517
    %v519 = vpop.f32.mrf.mxu0
    %v520 = vpop.f32.mrf.mxu0
    %v521 = vadd.f32 %v210, %v520
    %v522 = vpop.f32.mrf.mxu0
    %523 = vmatprep.mubr.bf16.mxu0 %v356
    %524 = vmatmul.mubr.bf16.gmra.mxu0 %v355
    %v525 = vpop.f32.mrf.mxu0
    %v526 = vadd.f32 %v211, %v525
    %v527 = vpop.f32.mrf.mxu0
    %v528 = vpop.f32.mrf.mxu0
    %v529 = vadd.f32 %v212, %v528
    %v530 = vpop.f32.mrf.mxu0
    %531 = vmatprep.mubr.bf16.mxu0 %v358
    %532 = vmatmul.mubr.bf16.gmra.mxu0 %v357
    %v533 = vpop.f32.mrf.mxu0
    %v534 = vadd.f32 %v213, %v533
    %v535 = vpop.f32.mrf.mxu0
    %v536 = vpop.f32.mrf.mxu0
    %v537 = vadd.f32 %v214, %v536
    %v538 = vpop.f32.mrf.mxu0
    %539 = vmatprep.mubr.bf16.mxu0 %v360
    %540 = vmatmul.mubr.bf16.gmra.mxu0 %v359
    %v541 = vpop.f32.mrf.mxu0
    %v542 = vadd.f32 %v215, %v541
    %v543 = vpop.f32.mrf.mxu0
    %v544 = vpop.f32.mrf.mxu0
    %v545 = vadd.f32 %v216, %v544
    %v546 = vpop.f32.mrf.mxu0
    %547 = vmatprep.mubr.bf16.mxu0 %v362
    %548 = vmatmul.mubr.bf16.gmra.mxu0 %v361
    %v549 = vpop.f32.mrf.mxu0
    %v550 = vadd.f32 %v217, %v549
    %v551 = vpop.f32.mrf.mxu0
    %v552 = vpop.f32.mrf.mxu0
    %v553 = vadd.f32 %v218, %v552
    %v554 = vpop.f32.mrf.mxu0
    %555 = vdwg.mxu0
    %v556 = vpack.c.bf16 %v433, %v430
    %v557 = vpack.c.bf16 %v441, %v438
    %v558 = vpack.c.bf16 %v449, %v446
    %v559 = vpack.c.bf16 %v457, %v454
    %v560 = vpack.c.bf16 %v465, %v462
    %v561 = vpack.c.bf16 %v473, %v470
    %v562 = vpack.c.bf16 %v481, %v478
    %v563 = vpack.c.bf16 %v489, %v486
    %v564 = vpack.c.bf16 %v497, %v494
    %v565 = vpack.c.bf16 %v505, %v502
    %v566 = vpack.c.bf16 %v513, %v510
    %v567 = vpack.c.bf16 %v521, %v518
    %v568 = vpack.c.bf16 %v529, %v526
    %v569 = vpack.c.bf16 %v537, %v534
    %v570 = vpack.c.bf16 %v545, %v542
    %v571 = vpack.c.bf16 %v553, %v550
    %v572 = vld [vmem:[#allocation7] sm:$0xf]
    %v573 = vld [vmem:[#allocation7 + $0x4] sm:$0xf]
    %v574 = vld [vmem:[#allocation7 + $0x8] sm:$0xf]
    %v575 = vld [vmem:[#allocation7 + $0xc] sm:$0xf]
    %v576 = vld [vmem:[#allocation7 + $0x10] sm:$0xf]
    %v577 = vld [vmem:[#allocation7 + $0x14] sm:$0xf]
    %v578 = vld [vmem:[#allocation7 + $0x18] sm:$0xf]
    %v579 = vld [vmem:[#allocation7 + $0x1c] sm:$0xf]
    %v580 = vld [vmem:[#allocation7 + $0x20] sm:$0xf]
    %v581 = vld [vmem:[#allocation7 + $0x24] sm:$0xf]
    %v582 = vld [vmem:[#allocation7 + $0x28] sm:$0xf]
    %v583 = vld [vmem:[#allocation7 + $0x2c] sm:$0xf]
    %v584 = vld [vmem:[#allocation7 + $0x30] sm:$0xf]
    %v585 = vld [vmem:[#allocation7 + $0x34] sm:$0xf]
    %v586 = vld [vmem:[#allocation7 + $0x38] sm:$0xf]
    %v587 = vld [vmem:[#allocation7 + $0x3c] sm:$0xf]
    %v588 = vld [vmem:[%s3] sm:$0x1]
    %v590 = vlaneseq
    %v591 = vshrl.u32 %v590, 7
    %v592 = vsub.s32 0, %v591
    %v593 = vrot.slane %v588, %v592
    %v611 = vunpack.c.l.b16 %v572
    %v612 = vunpack.c.l.b16 %v573
    %v613 = vunpack.c.l.b16 %v574
    %v614 = vunpack.c.l.b16 %v575
    %v615 = vunpack.c.l.b16 %v576
    %v616 = vunpack.c.l.b16 %v577
    %v617 = vunpack.c.l.b16 %v578
    %v618 = vunpack.c.l.b16 %v579
    %v619 = vunpack.c.l.b16 %v580
    %v620 = vunpack.c.l.b16 %v581
    %v621 = vunpack.c.l.b16 %v582
    %v622 = vunpack.c.l.b16 %v583
    %v623 = vunpack.c.l.b16 %v584
    %v624 = vunpack.c.l.b16 %v585
    %v625 = vunpack.c.l.b16 %v586
    %v626 = vunpack.c.l.b16 %v587
    %v627 = vpack.c.b16 %v612, %v611
    %v628 = vpack.c.b16 %v614, %v613
    %v629 = vpack.c.b16 %v616, %v615
    %v630 = vpack.c.b16 %v618, %v617
    %v631 = vpack.c.b16 %v620, %v619
    %v632 = vpack.c.b16 %v622, %v621
    %v633 = vpack.c.b16 %v624, %v623
    %v634 = vpack.c.b16 %v626, %v625
    %643 = vmatprep.subr.bf16.mxu0 0
    %644 = vmatpush1.bf16.msra.mxu0 %v634
    %645 = vmatprep.subr.bf16.mxu0 0
    %646 = vmatpush1.bf16.msra.mxu0 %v633
    %647 = vmatprep.subr.bf16.mxu0 0
    %648 = vmatpush1.bf16.msra.mxu0 %v632
    %649 = vmatprep.subr.bf16.mxu0 0
    %650 = vmatpush1.bf16.msra.mxu0 %v631
    %651 = vmatprep.subr.bf16.mxu0 0
    %652 = vmatpush1.bf16.msra.mxu0 %v630
    %653 = vmatprep.subr.bf16.mxu0 0
    %654 = vmatpush1.bf16.msra.mxu0 %v629
    %655 = vmatprep.subr.bf16.mxu0 0
    %656 = vmatpush1.bf16.msra.mxu0 %v628
    %657 = vmatprep.subr.bf16.mxu0 0
    %658 = vmatpush1.bf16.msra.mxu0 %v627
    %659 = vmatprep.subr.bf16.mxu0 0
    %660 = vmatpush2.bf16.msra.mxu0 0
    %661 = vmatprep.subr.bf16.mxu0 0
    %662 = vmatpush2.bf16.msra.mxu0 0
    %663 = vmatprep.subr.bf16.mxu0 0
    %664 = vmatpush2.bf16.msra.mxu0 0
    %665 = vmatprep.subr.bf16.mxu0 0
    %666 = vmatpush2.bf16.msra.mxu0 0
    %667 = vmatprep.subr.bf16.mxu0 0
    %668 = vmatpush2.bf16.msra.mxu0 0
    %669 = vmatprep.subr.bf16.mxu0 0
    %670 = vmatpush2.bf16.msra.mxu0 0
    %671 = vmatprep.subr.bf16.mxu0 0
    %672 = vmatpush2.bf16.msra.mxu0 0
    %673 = vmatprep.subr.bf16.mxu0 0
    %674 = vmatpush2.bf16.msra.mxu0 0
    %675 = vmatprep.mubr.bf16.mxu0 0
    %676 = vmatmul.mubr.bf16.gmra.mxu0 %v556
    %v677 = vpop.f32.mrf.mxu0
    %v678 = vadd.f32 %v593, %v677
    %v679 = vpop.f32.mrf.mxu0
    %v680 = vpop.f32.mrf.mxu0
    %v681 = vadd.f32 %v593, %v680
    %v682 = vpop.f32.mrf.mxu0
    %683 = vmatprep.mubr.bf16.mxu0 0
    %684 = vmatmul.mubr.bf16.gmra.mxu0 %v557
    %v685 = vpop.f32.mrf.mxu0
    %v686 = vadd.f32 %v593, %v685
    %v687 = vpop.f32.mrf.mxu0
    %v688 = vpop.f32.mrf.mxu0
    %v689 = vadd.f32 %v593, %v688
    %v690 = vpop.f32.mrf.mxu0
    %691 = vmatprep.mubr.bf16.mxu0 0
    %692 = vmatmul.mubr.bf16.gmra.mxu0 %v558
    %v693 = vpop.f32.mrf.mxu0
    %v694 = vadd.f32 %v593, %v693
    %v695 = vpop.f32.mrf.mxu0
    %v696 = vpop.f32.mrf.mxu0
    %v697 = vadd.f32 %v593, %v696
    %v698 = vpop.f32.mrf.mxu0
    %699 = vmatprep.mubr.bf16.mxu0 0
    %700 = vmatmul.mubr.bf16.gmra.mxu0 %v559
    %v701 = vpop.f32.mrf.mxu0
    %v702 = vadd.f32 %v593, %v701
    %v703 = vpop.f32.mrf.mxu0
    %v704 = vpop.f32.mrf.mxu0
    %v705 = vadd.f32 %v593, %v704
    %v706 = vpop.f32.mrf.mxu0
    %707 = vmatprep.mubr.bf16.mxu0 0
    %708 = vmatmul.mubr.bf16.gmra.mxu0 %v560
    %v709 = vpop.f32.mrf.mxu0
    %v710 = vadd.f32 %v593, %v709
    %v711 = vpop.f32.mrf.mxu0
    %v712 = vpop.f32.mrf.mxu0
    %v713 = vadd.f32 %v593, %v712
    %v714 = vpop.f32.mrf.mxu0
    %715 = vmatprep.mubr.bf16.mxu0 0
    %716 = vmatmul.mubr.bf16.gmra.mxu0 %v561
    %v717 = vpop.f32.mrf.mxu0
    %v718 = vadd.f32 %v593, %v717
    %v719 = vpop.f32.mrf.mxu0
    %v720 = vpop.f32.mrf.mxu0
    %v721 = vadd.f32 %v593, %v720
    %v722 = vpop.f32.mrf.mxu0
    %723 = vmatprep.mubr.bf16.mxu0 0
    %724 = vmatmul.mubr.bf16.gmra.mxu0 %v562
    %v725 = vpop.f32.mrf.mxu0
    %v726 = vadd.f32 %v593, %v725
    %v727 = vpop.f32.mrf.mxu0
    %v728 = vpop.f32.mrf.mxu0
    %v729 = vadd.f32 %v593, %v728
    %v730 = vpop.f32.mrf.mxu0
    %731 = vmatprep.mubr.bf16.mxu0 0
    %732 = vmatmul.mubr.bf16.gmra.mxu0 %v563
    %v733 = vpop.f32.mrf.mxu0
    %v734 = vadd.f32 %v593, %v733
    %v735 = vpop.f32.mrf.mxu0
    %v736 = vpop.f32.mrf.mxu0
    %v737 = vadd.f32 %v593, %v736
    %v738 = vpop.f32.mrf.mxu0
    %739 = vmatprep.mubr.bf16.mxu0 0
    %740 = vmatmul.mubr.bf16.gmra.mxu0 %v564
    %v741 = vpop.f32.mrf.mxu0
    %v742 = vadd.f32 %v593, %v741
    %v743 = vpop.f32.mrf.mxu0
    %v744 = vpop.f32.mrf.mxu0
    %v745 = vadd.f32 %v593, %v744
    %v746 = vpop.f32.mrf.mxu0
    %747 = vmatprep.mubr.bf16.mxu0 0
    %748 = vmatmul.mubr.bf16.gmra.mxu0 %v565
    %v749 = vpop.f32.mrf.mxu0
    %v750 = vadd.f32 %v593, %v749
    %v751 = vpop.f32.mrf.mxu0
    %v752 = vpop.f32.mrf.mxu0
    %v753 = vadd.f32 %v593, %v752
    %v754 = vpop.f32.mrf.mxu0
    %755 = vmatprep.mubr.bf16.mxu0 0
    %756 = vmatmul.mubr.bf16.gmra.mxu0 %v566
    %v757 = vpop.f32.mrf.mxu0
    %v758 = vadd.f32 %v593, %v757
    %v759 = vpop.f32.mrf.mxu0
    %v760 = vpop.f32.mrf.mxu0
    %v761 = vadd.f32 %v593, %v760
    %v762 = vpop.f32.mrf.mxu0
    %763 = vmatprep.mubr.bf16.mxu0 0
    %764 = vmatmul.mubr.bf16.gmra.mxu0 %v567
    %v765 = vpop.f32.mrf.mxu0
    %v766 = vadd.f32 %v593, %v765
    %v767 = vpop.f32.mrf.mxu0
    %v768 = vpop.f32.mrf.mxu0
    %v769 = vadd.f32 %v593, %v768
    %v770 = vpop.f32.mrf.mxu0
    %771 = vmatprep.mubr.bf16.mxu0 0
    %772 = vmatmul.mubr.bf16.gmra.mxu0 %v568
    %v773 = vpop.f32.mrf.mxu0
    %v774 = vadd.f32 %v593, %v773
    %v775 = vpop.f32.mrf.mxu0
    %v776 = vpop.f32.mrf.mxu0
    %v777 = vadd.f32 %v593, %v776
    %v778 = vpop.f32.mrf.mxu0
    %779 = vmatprep.mubr.bf16.mxu0 0
    %780 = vmatmul.mubr.bf16.gmra.mxu0 %v569
    %v781 = vpop.f32.mrf.mxu0
    %v782 = vadd.f32 %v593, %v781
    %v783 = vpop.f32.mrf.mxu0
    %v784 = vpop.f32.mrf.mxu0
    %v785 = vadd.f32 %v593, %v784
    %v786 = vpop.f32.mrf.mxu0
    %787 = vmatprep.mubr.bf16.mxu0 0
    %788 = vmatmul.mubr.bf16.gmra.mxu0 %v570
    %v789 = vpop.f32.mrf.mxu0
    %v790 = vadd.f32 %v593, %v789
    %v791 = vpop.f32.mrf.mxu0
    %v792 = vpop.f32.mrf.mxu0
    %v793 = vadd.f32 %v593, %v792
    %v794 = vpop.f32.mrf.mxu0
    %795 = vmatprep.mubr.bf16.mxu0 0
    %796 = vmatmul.mubr.bf16.gmra.mxu0 %v571
    %v797 = vpop.f32.mrf.mxu0
    %v798 = vadd.f32 %v593, %v797
    %v799 = vpop.f32.mrf.mxu0
    %v800 = vpop.f32.mrf.mxu0
    %v801 = vadd.f32 %v593, %v800
    %v802 = vpop.f32.mrf.mxu0
    %803 = vdwg.mxu0
    %v804 = vmax.f32 %v678, 0.0
    %v805 = vmax.f32 %v681, 0.0
    %v806 = vmax.f32 %v686, 0.0
    %v807 = vmax.f32 %v689, 0.0
    %v808 = vmax.f32 %v694, 0.0
    %v809 = vmax.f32 %v697, 0.0
    %v810 = vmax.f32 %v702, 0.0
    %v811 = vmax.f32 %v705, 0.0
    %v812 = vmax.f32 %v710, 0.0
    %v813 = vmax.f32 %v713, 0.0
    %v814 = vmax.f32 %v718, 0.0
    %v815 = vmax.f32 %v721, 0.0
    %v816 = vmax.f32 %v726, 0.0
    %v817 = vmax.f32 %v729, 0.0
    %v818 = vmax.f32 %v734, 0.0
    %v819 = vmax.f32 %v737, 0.0
    %v820 = vmax.f32 %v742, 0.0
    %v821 = vmax.f32 %v745, 0.0
    %v822 = vmax.f32 %v750, 0.0
    %v823 = vmax.f32 %v753, 0.0
    %v824 = vmax.f32 %v758, 0.0
    %v825 = vmax.f32 %v761, 0.0
    %v826 = vmax.f32 %v766, 0.0
    %v827 = vmax.f32 %v769, 0.0
    %v828 = vmax.f32 %v774, 0.0
    %v829 = vmax.f32 %v777, 0.0
    %v830 = vmax.f32 %v782, 0.0
    %v831 = vmax.f32 %v785, 0.0
    %v832 = vmax.f32 %v790, 0.0
    %v833 = vmax.f32 %v793, 0.0
    %v834 = vmax.f32 %v798, 0.0
    %v835 = vmax.f32 %v801, 0.0
    %v836 = vpack.c.bf16 %v805, %v804
    %v837 = vpack.c.bf16 %v807, %v806
    %v838 = vpack.c.bf16 %v809, %v808
    %v839 = vpack.c.bf16 %v811, %v810
    %v840 = vpack.c.bf16 %v813, %v812
    %v841 = vpack.c.bf16 %v815, %v814
    %v842 = vpack.c.bf16 %v817, %v816
    %v843 = vpack.c.bf16 %v819, %v818
    %v844 = vpack.c.bf16 %v821, %v820
    %v845 = vpack.c.bf16 %v823, %v822
    %v846 = vpack.c.bf16 %v825, %v824
    %v847 = vpack.c.bf16 %v827, %v826
    %v848 = vpack.c.bf16 %v829, %v828
    %v849 = vpack.c.bf16 %v831, %v830
    %v850 = vpack.c.bf16 %v833, %v832
    %v851 = vpack.c.bf16 %v835, %v834
    %v852 = vld [vmem:[#allocation8] sm:$0xf]
    %v853 = vld [vmem:[#allocation8 + $0x4] sm:$0xf]
    %v854 = vld [vmem:[#allocation8 + $0x8] sm:$0xf]
    %v855 = vld [vmem:[#allocation8 + $0xc] sm:$0xf]
    %v856 = vld [vmem:[#allocation8 + $0x10] sm:$0xf]
    %v857 = vld [vmem:[#allocation8 + $0x14] sm:$0xf]
    %v858 = vld [vmem:[#allocation8 + $0x18] sm:$0xf]
    %v859 = vld [vmem:[#allocation8 + $0x1c] sm:$0xf]
    %v860 = vld [vmem:[#allocation8 + $0x20] sm:$0xf]
    %v861 = vld [vmem:[#allocation8 + $0x24] sm:$0xf]
    %v862 = vld [vmem:[#allocation8 + $0x28] sm:$0xf]
    %v863 = vld [vmem:[#allocation8 + $0x2c] sm:$0xf]
    %v864 = vld [vmem:[#allocation8 + $0x30] sm:$0xf]
    %v865 = vld [vmem:[#allocation8 + $0x34] sm:$0xf]
    %v866 = vld [vmem:[#allocation8 + $0x38] sm:$0xf]
    %v867 = vld [vmem:[#allocation8 + $0x3c] sm:$0xf]
    %v868 = vld [vmem:[%s5] sm:$0x1]
    %v870 = vlaneseq
    %v871 = vshrl.u32 %v870, 7
    %v872 = vsub.s32 0, %v871
    %v873 = vrot.slane %v868, %v872
    %v891 = vunpack.c.l.b16 %v852
    %v892 = vunpack.c.l.b16 %v853
    %v893 = vunpack.c.l.b16 %v854
    %v894 = vunpack.c.l.b16 %v855
    %v895 = vunpack.c.l.b16 %v856
    %v896 = vunpack.c.l.b16 %v857
    %v897 = vunpack.c.l.b16 %v858
    %v898 = vunpack.c.l.b16 %v859
    %v899 = vunpack.c.l.b16 %v860
    %v900 = vunpack.c.l.b16 %v861
    %v901 = vunpack.c.l.b16 %v862
    %v902 = vunpack.c.l.b16 %v863
    %v903 = vunpack.c.l.b16 %v864
    %v904 = vunpack.c.l.b16 %v865
    %v905 = vunpack.c.l.b16 %v866
    %v906 = vunpack.c.l.b16 %v867
    %v907 = vpack.c.b16 %v892, %v891
    %v908 = vpack.c.b16 %v894, %v893
    %v909 = vpack.c.b16 %v896, %v895
    %v910 = vpack.c.b16 %v898, %v897
    %v911 = vpack.c.b16 %v900, %v899
    %v912 = vpack.c.b16 %v902, %v901
    %v913 = vpack.c.b16 %v904, %v903
    %v914 = vpack.c.b16 %v906, %v905
    %923 = vmatprep.subr.bf16.mxu0 0
    %924 = vmatpush1.bf16.msra.mxu0 %v914
    %925 = vmatprep.subr.bf16.mxu0 0
    %926 = vmatpush1.bf16.msra.mxu0 %v913
    %927 = vmatprep.subr.bf16.mxu0 0
    %928 = vmatpush1.bf16.msra.mxu0 %v912
    %929 = vmatprep.subr.bf16.mxu0 0
    %930 = vmatpush1.bf16.msra.mxu0 %v911
    %931 = vmatprep.subr.bf16.mxu0 0
    %932 = vmatpush1.bf16.msra.mxu0 %v910
    %933 = vmatprep.subr.bf16.mxu0 0
    %934 = vmatpush1.bf16.msra.mxu0 %v909
    %935 = vmatprep.subr.bf16.mxu0 0
    %936 = vmatpush1.bf16.msra.mxu0 %v908
    %937 = vmatprep.subr.bf16.mxu0 0
    %938 = vmatpush1.bf16.msra.mxu0 %v907
    %939 = vmatprep.subr.bf16.mxu0 0
    %940 = vmatpush2.bf16.msra.mxu0 0
    %941 = vmatprep.subr.bf16.mxu0 0
    %942 = vmatpush2.bf16.msra.mxu0 0
    %943 = vmatprep.subr.bf16.mxu0 0
    %944 = vmatpush2.bf16.msra.mxu0 0
    %945 = vmatprep.subr.bf16.mxu0 0
    %946 = vmatpush2.bf16.msra.mxu0 0
    %947 = vmatprep.subr.bf16.mxu0 0
    %948 = vmatpush2.bf16.msra.mxu0 0
    %949 = vmatprep.subr.bf16.mxu0 0
    %950 = vmatpush2.bf16.msra.mxu0 0
    %951 = vmatprep.subr.bf16.mxu0 0
    %952 = vmatpush2.bf16.msra.mxu0 0
    %953 = vmatprep.subr.bf16.mxu0 0
    %954 = vmatpush2.bf16.msra.mxu0 0
    %955 = vmatprep.mubr.bf16.mxu0 0
    %956 = vmatmul.mubr.bf16.gmra.mxu0 %v836
    %v957 = vpop.f32.mrf.mxu0
    %v958 = vadd.f32 %v873, %v957
    %v959 = vpop.f32.mrf.mxu0
    %v960 = vpop.f32.mrf.mxu0
    %v961 = vadd.f32 %v873, %v960
    %v962 = vpop.f32.mrf.mxu0
    %963 = vmatprep.mubr.bf16.mxu0 0
    %964 = vmatmul.mubr.bf16.gmra.mxu0 %v837
    %v965 = vpop.f32.mrf.mxu0
    %v966 = vadd.f32 %v873, %v965
    %v967 = vpop.f32.mrf.mxu0
    %v968 = vpop.f32.mrf.mxu0
    %v969 = vadd.f32 %v873, %v968
    %v970 = vpop.f32.mrf.mxu0
    %971 = vmatprep.mubr.bf16.mxu0 0
    %972 = vmatmul.mubr.bf16.gmra.mxu0 %v838
    %v973 = vpop.f32.mrf.mxu0
    %v974 = vadd.f32 %v873, %v973
    %v975 = vpop.f32.mrf.mxu0
    %v976 = vpop.f32.mrf.mxu0
    %v977 = vadd.f32 %v873, %v976
    %v978 = vpop.f32.mrf.mxu0
    %979 = vmatprep.mubr.bf16.mxu0 0
    %980 = vmatmul.mubr.bf16.gmra.mxu0 %v839
    %v981 = vpop.f32.mrf.mxu0
    %v982 = vadd.f32 %v873, %v981
    %v983 = vpop.f32.mrf.mxu0
    %v984 = vpop.f32.mrf.mxu0
    %v985 = vadd.f32 %v873, %v984
    %v986 = vpop.f32.mrf.mxu0
    %987 = vmatprep.mubr.bf16.mxu0 0
    %988 = vmatmul.mubr.bf16.gmra.mxu0 %v840
    %v989 = vpop.f32.mrf.mxu0
    %v990 = vadd.f32 %v873, %v989
    %v991 = vpop.f32.mrf.mxu0
    %v992 = vpop.f32.mrf.mxu0
    %v993 = vadd.f32 %v873, %v992
    %v994 = vpop.f32.mrf.mxu0
    %995 = vmatprep.mubr.bf16.mxu0 0
    %996 = vmatmul.mubr.bf16.gmra.mxu0 %v841
    %v997 = vpop.f32.mrf.mxu0
    %v998 = vadd.f32 %v873, %v997
    %v999 = vpop.f32.mrf.mxu0
    %v1000 = vpop.f32.mrf.mxu0
    %v1001 = vadd.f32 %v873, %v1000
    %v1002 = vpop.f32.mrf.mxu0
    %1003 = vmatprep.mubr.bf16.mxu0 0
    %1004 = vmatmul.mubr.bf16.gmra.mxu0 %v842
    %v1005 = vpop.f32.mrf.mxu0
    %v1006 = vadd.f32 %v873, %v1005
    %v1007 = vpop.f32.mrf.mxu0
    %v1008 = vpop.f32.mrf.mxu0
    %v1009 = vadd.f32 %v873, %v1008
    %v1010 = vpop.f32.mrf.mxu0
    %1011 = vmatprep.mubr.bf16.mxu0 0
    %1012 = vmatmul.mubr.bf16.gmra.mxu0 %v843
    %v1013 = vpop.f32.mrf.mxu0
    %v1014 = vadd.f32 %v873, %v1013
    %v1015 = vpop.f32.mrf.mxu0
    %v1016 = vpop.f32.mrf.mxu0
    %v1017 = vadd.f32 %v873, %v1016
    %v1018 = vpop.f32.mrf.mxu0
    %1019 = vmatprep.mubr.bf16.mxu0 0
    %1020 = vmatmul.mubr.bf16.gmra.mxu0 %v844
    %v1021 = vpop.f32.mrf.mxu0
    %v1022 = vadd.f32 %v873, %v1021
    %v1023 = vpop.f32.mrf.mxu0
    %v1024 = vpop.f32.mrf.mxu0
    %v1025 = vadd.f32 %v873, %v1024
    %v1026 = vpop.f32.mrf.mxu0
    %1027 = vmatprep.mubr.bf16.mxu0 0
    %1028 = vmatmul.mubr.bf16.gmra.mxu0 %v845
    %v1029 = vpop.f32.mrf.mxu0
    %v1030 = vadd.f32 %v873, %v1029
    %v1031 = vpop.f32.mrf.mxu0
    %v1032 = vpop.f32.mrf.mxu0
    %v1033 = vadd.f32 %v873, %v1032
    %v1034 = vpop.f32.mrf.mxu0
    %1035 = vmatprep.mubr.bf16.mxu0 0
    %1036 = vmatmul.mubr.bf16.gmra.mxu0 %v846
    %v1037 = vpop.f32.mrf.mxu0
    %v1038 = vadd.f32 %v873, %v1037
    %v1039 = vpop.f32.mrf.mxu0
    %v1040 = vpop.f32.mrf.mxu0
    %v1041 = vadd.f32 %v873, %v1040
    %v1042 = vpop.f32.mrf.mxu0
    %1043 = vmatprep.mubr.bf16.mxu0 0
    %1044 = vmatmul.mubr.bf16.gmra.mxu0 %v847
    %v1045 = vpop.f32.mrf.mxu0
    %v1046 = vadd.f32 %v873, %v1045
    %v1047 = vpop.f32.mrf.mxu0
    %v1048 = vpop.f32.mrf.mxu0
    %v1049 = vadd.f32 %v873, %v1048
    %v1050 = vpop.f32.mrf.mxu0
    %1051 = vmatprep.mubr.bf16.mxu0 0
    %1052 = vmatmul.mubr.bf16.gmra.mxu0 %v848
    %v1053 = vpop.f32.mrf.mxu0
    %v1054 = vadd.f32 %v873, %v1053
    %v1055 = vpop.f32.mrf.mxu0
    %v1056 = vpop.f32.mrf.mxu0
    %v1057 = vadd.f32 %v873, %v1056
    %v1058 = vpop.f32.mrf.mxu0
    %1059 = vmatprep.mubr.bf16.mxu0 0
    %1060 = vmatmul.mubr.bf16.gmra.mxu0 %v849
    %v1061 = vpop.f32.mrf.mxu0
    %v1062 = vadd.f32 %v873, %v1061
    %v1063 = vpop.f32.mrf.mxu0
    %v1064 = vpop.f32.mrf.mxu0
    %v1065 = vadd.f32 %v873, %v1064
    %v1066 = vpop.f32.mrf.mxu0
    %1067 = vmatprep.mubr.bf16.mxu0 0
    %1068 = vmatmul.mubr.bf16.gmra.mxu0 %v850
    %v1069 = vpop.f32.mrf.mxu0
    %v1070 = vadd.f32 %v873, %v1069
    %v1071 = vpop.f32.mrf.mxu0
    %v1072 = vpop.f32.mrf.mxu0
    %v1073 = vadd.f32 %v873, %v1072
    %v1074 = vpop.f32.mrf.mxu0
    %1075 = vmatprep.mubr.bf16.mxu0 0
    %1076 = vmatmul.mubr.bf16.gmra.mxu0 %v851
    %v1077 = vpop.f32.mrf.mxu0
    %v1078 = vadd.f32 %v873, %v1077
    %v1079 = vpop.f32.mrf.mxu0
    %v1080 = vpop.f32.mrf.mxu0
    %v1081 = vadd.f32 %v873, %v1080
    %v1082 = vpop.f32.mrf.mxu0
    %1083 = vdwg.mxu0
    %v1084 = vmax.f32 %v958, 0.0
    %v1085 = vmax.f32 %v961, 0.0
    %v1086 = vmax.f32 %v966, 0.0
    %v1087 = vmax.f32 %v969, 0.0
    %v1088 = vmax.f32 %v974, 0.0
    %v1089 = vmax.f32 %v977, 0.0
    %v1090 = vmax.f32 %v982, 0.0
    %v1091 = vmax.f32 %v985, 0.0
    %v1092 = vmax.f32 %v990, 0.0
    %v1093 = vmax.f32 %v993, 0.0
    %v1094 = vmax.f32 %v998, 0.0
    %v1095 = vmax.f32 %v1001, 0.0
    %v1096 = vmax.f32 %v1006, 0.0
    %v1097 = vmax.f32 %v1009, 0.0
    %v1098 = vmax.f32 %v1014, 0.0
    %v1099 = vmax.f32 %v1017, 0.0
    %v1100 = vmax.f32 %v1022, 0.0
    %v1101 = vmax.f32 %v1025, 0.0
    %v1102 = vmax.f32 %v1030, 0.0
    %v1103 = vmax.f32 %v1033, 0.0
    %v1104 = vmax.f32 %v1038, 0.0
    %v1105 = vmax.f32 %v1041, 0.0
    %v1106 = vmax.f32 %v1046, 0.0
    %v1107 = vmax.f32 %v1049, 0.0
    %v1108 = vmax.f32 %v1054, 0.0
    %v1109 = vmax.f32 %v1057, 0.0
    %v1110 = vmax.f32 %v1062, 0.0
    %v1111 = vmax.f32 %v1065, 0.0
    %v1112 = vmax.f32 %v1070, 0.0
    %v1113 = vmax.f32 %v1073, 0.0
    %v1114 = vmax.f32 %v1078, 0.0
    %v1115 = vmax.f32 %v1081, 0.0
    %v1116 = vpack.c.bf16 %v1085, %v1084
    %v1117 = vpack.c.bf16 %v1087, %v1086
    %v1118 = vpack.c.bf16 %v1089, %v1088
    %v1119 = vpack.c.bf16 %v1091, %v1090
    %v1120 = vpack.c.bf16 %v1093, %v1092
    %v1121 = vpack.c.bf16 %v1095, %v1094
    %v1122 = vpack.c.bf16 %v1097, %v1096
    %v1123 = vpack.c.bf16 %v1099, %v1098
    %v1124 = vpack.c.bf16 %v1101, %v1100
    %v1125 = vpack.c.bf16 %v1103, %v1102
    %v1126 = vpack.c.bf16 %v1105, %v1104
    %v1127 = vpack.c.bf16 %v1107, %v1106
    %v1128 = vpack.c.bf16 %v1109, %v1108
    %v1129 = vpack.c.bf16 %v1111, %v1110
    %v1130 = vpack.c.bf16 %v1113, %v1112
    %v1131 = vpack.c.bf16 %v1115, %v1114
    %1132 = vmatprep.subr.bf16.mxu0 0
    %1133 = vmatpush1.bf16.msra.mxu0 %v1123
    %1134 = vmatprep.subr.bf16.mxu0 0
    %1135 = vmatpush1.bf16.msra.mxu0 %v1122
    %1136 = vmatprep.subr.bf16.mxu0 0
    %1137 = vmatpush1.bf16.msra.mxu0 %v1121
    %1138 = vmatprep.subr.bf16.mxu0 0
    %1139 = vmatpush1.bf16.msra.mxu0 %v1120
    %1140 = vmatprep.subr.bf16.mxu0 0
    %1141 = vmatpush1.bf16.msra.mxu0 %v1119
    %1142 = vmatprep.subr.bf16.mxu0 0
    %1143 = vmatpush1.bf16.msra.mxu0 %v1118
    %1144 = vmatprep.subr.bf16.mxu0 0
    %1145 = vmatpush1.bf16.msra.mxu0 %v1117
    %1146 = vmatprep.subr.bf16.mxu0 0
    %1147 = vmatpush1.bf16.msra.mxu0 %v1116
    %1148 = vmatprep.subr.bf16.mxu0 0
    %1149 = vmatpush2.bf16.msra.mxu0 %v1131
    %1150 = vmatprep.subr.bf16.mxu0 0
    %1151 = vmatpush2.bf16.msra.mxu0 %v1130
    %1152 = vmatprep.subr.bf16.mxu0 0
    %1153 = vmatpush2.bf16.msra.mxu0 %v1129
    %1154 = vmatprep.subr.bf16.mxu0 0
    %1155 = vmatpush2.bf16.msra.mxu0 %v1128
    %1156 = vmatprep.subr.bf16.mxu0 0
    %1157 = vmatpush2.bf16.msra.mxu0 %v1127
    %1158 = vmatprep.subr.bf16.mxu0 0
    %1159 = vmatpush2.bf16.msra.mxu0 %v1126
    %1160 = vmatprep.subr.bf16.mxu0 0
    %1161 = vmatpush2.bf16.msra.mxu0 %v1125
    %1162 = vmatprep.subr.bf16.mxu0 0
    %1163 = vmatpush2.bf16.msra.mxu0 %v1124
    %1164 = vmatprep.mubr.bf16.mxu0 %v332
    %1165 = vmatmul.mubr.bf16.gmra.mxu0 %v331
    %v1166 = vpop.f32.mrf.mxu0
    %v1167 = vadd.f32 %v1084, %v1166
    %v1168 = vpop.f32.mrf.mxu0
    %v1169 = vpop.f32.mrf.mxu0
    %v1170 = vadd.f32 %v1085, %v1169
    %v1171 = vpop.f32.mrf.mxu0
    %1172 = vmatprep.mubr.bf16.mxu0 %v334
    %1173 = vmatmul.mubr.bf16.gmra.mxu0 %v333
    %v1174 = vpop.f32.mrf.mxu0
    %v1175 = vadd.f32 %v1086, %v1174
    %v1176 = vpop.f32.mrf.mxu0
    %v1177 = vpop.f32.mrf.mxu0
    %v1178 = vadd.f32 %v1087, %v1177
    %v1179 = vpop.f32.mrf.mxu0
    %1180 = vmatprep.mubr.bf16.mxu0 %v336
    %1181 = vmatmul.mubr.bf16.gmra.mxu0 %v335
    %v1182 = vpop.f32.mrf.mxu0
    %v1183 = vadd.f32 %v1088, %v1182
    %v1184 = vpop.f32.mrf.mxu0
    %v1185 = vpop.f32.mrf.mxu0
    %v1186 = vadd.f32 %v1089, %v1185
    %v1187 = vpop.f32.mrf.mxu0
    %1188 = vmatprep.mubr.bf16.mxu0 %v338
    %1189 = vmatmul.mubr.bf16.gmra.mxu0 %v337
    %v1190 = vpop.f32.mrf.mxu0
    %v1191 = vadd.f32 %v1090, %v1190
    %v1192 = vpop.f32.mrf.mxu0
    %v1193 = vpop.f32.mrf.mxu0
    %v1194 = vadd.f32 %v1091, %v1193
    %v1195 = vpop.f32.mrf.mxu0
    %1196 = vmatprep.mubr.bf16.mxu0 %v340
    %1197 = vmatmul.mubr.bf16.gmra.mxu0 %v339
    %v1198 = vpop.f32.mrf.mxu0
    %v1199 = vadd.f32 %v1092, %v1198
    %v1200 = vpop.f32.mrf.mxu0
    %v1201 = vpop.f32.mrf.mxu0
    %v1202 = vadd.f32 %v1093, %v1201
    %v1203 = vpop.f32.mrf.mxu0
    %1204 = vmatprep.mubr.bf16.mxu0 %v342
    %1205 = vmatmul.mubr.bf16.gmra.mxu0 %v341
    %v1206 = vpop.f32.mrf.mxu0
    %v1207 = vadd.f32 %v1094, %v1206
    %v1208 = vpop.f32.mrf.mxu0
    %v1209 = vpop.f32.mrf.mxu0
    %v1210 = vadd.f32 %v1095, %v1209
    %v1211 = vpop.f32.mrf.mxu0
    %1212 = vmatprep.mubr.bf16.mxu0 %v344
    %1213 = vmatmul.mubr.bf16.gmra.mxu0 %v343
    %v1214 = vpop.f32.mrf.mxu0
    %v1215 = vadd.f32 %v1096, %v1214
    %v1216 = vpop.f32.mrf.mxu0
    %v1217 = vpop.f32.mrf.mxu0
    %v1218 = vadd.f32 %v1097, %v1217
    %v1219 = vpop.f32.mrf.mxu0
    %1220 = vmatprep.mubr.bf16.mxu0 %v346
    %1221 = vmatmul.mubr.bf16.gmra.mxu0 %v345
    %v1222 = vpop.f32.mrf.mxu0
    %v1223 = vadd.f32 %v1098, %v1222
    %v1224 = vpop.f32.mrf.mxu0
    %v1225 = vpop.f32.mrf.mxu0
    %v1226 = vadd.f32 %v1099, %v1225
    %v1227 = vpop.f32.mrf.mxu0
    %1228 = vmatprep.mubr.bf16.mxu0 %v348
    %1229 = vmatmul.mubr.bf16.gmra.mxu0 %v347
    %v1230 = vpop.f32.mrf.mxu0
    %v1231 = vadd.f32 %v1100, %v1230
    %v1232 = vpop.f32.mrf.mxu0
    %v1233 = vpop.f32.mrf.mxu0
    %v1234 = vadd.f32 %v1101, %v1233
    %v1235 = vpop.f32.mrf.mxu0
    %1236 = vmatprep.mubr.bf16.mxu0 %v350
    %1237 = vmatmul.mubr.bf16.gmra.mxu0 %v349
    %v1238 = vpop.f32.mrf.mxu0
    %v1239 = vadd.f32 %v1102, %v1238
    %v1240 = vpop.f32.mrf.mxu0
    %v1241 = vpop.f32.mrf.mxu0
    %v1242 = vadd.f32 %v1103, %v1241
    %v1243 = vpop.f32.mrf.mxu0
    %1244 = vmatprep.mubr.bf16.mxu0 %v352
    %1245 = vmatmul.mubr.bf16.gmra.mxu0 %v351
    %v1246 = vpop.f32.mrf.mxu0
    %v1247 = vadd.f32 %v1104, %v1246
    %v1248 = vpop.f32.mrf.mxu0
    %v1249 = vpop.f32.mrf.mxu0
    %v1250 = vadd.f32 %v1105, %v1249
    %v1251 = vpop.f32.mrf.mxu0
    %1252 = vmatprep.mubr.bf16.mxu0 %v354
    %1253 = vmatmul.mubr.bf16.gmra.mxu0 %v353
    %v1254 = vpop.f32.mrf.mxu0
    %v1255 = vadd.f32 %v1106, %v1254
    %v1256 = vpop.f32.mrf.mxu0
    %v1257 = vpop.f32.mrf.mxu0
    %v1258 = vadd.f32 %v1107, %v1257
    %v1259 = vpop.f32.mrf.mxu0
    %1260 = vmatprep.mubr.bf16.mxu0 %v356
    %1261 = vmatmul.mubr.bf16.gmra.mxu0 %v355
    %v1262 = vpop.f32.mrf.mxu0
    %v1263 = vadd.f32 %v1108, %v1262
    %v1264 = vpop.f32.mrf.mxu0
    %v1265 = vpop.f32.mrf.mxu0
    %v1266 = vadd.f32 %v1109, %v1265
    %v1267 = vpop.f32.mrf.mxu0
    %1268 = vmatprep.mubr.bf16.mxu0 %v358
    %1269 = vmatmul.mubr.bf16.gmra.mxu0 %v357
    %v1270 = vpop.f32.mrf.mxu0
    %v1271 = vadd.f32 %v1110, %v1270
    %v1272 = vpop.f32.mrf.mxu0
    %v1273 = vpop.f32.mrf.mxu0
    %v1274 = vadd.f32 %v1111, %v1273
    %v1275 = vpop.f32.mrf.mxu0
    %1276 = vmatprep.mubr.bf16.mxu0 %v360
    %1277 = vmatmul.mubr.bf16.gmra.mxu0 %v359
    %v1278 = vpop.f32.mrf.mxu0
    %v1279 = vadd.f32 %v1112, %v1278
    %v1280 = vpop.f32.mrf.mxu0
    %v1281 = vpop.f32.mrf.mxu0
    %v1282 = vadd.f32 %v1113, %v1281
    %v1283 = vpop.f32.mrf.mxu0
    %1284 = vmatprep.mubr.bf16.mxu0 %v362
    %1285 = vmatmul.mubr.bf16.gmra.mxu0 %v361
    %v1286 = vpop.f32.mrf.mxu0
    %v1287 = vadd.f32 %v1114, %v1286
    %v1288 = vpop.f32.mrf.mxu0
    %v1289 = vpop.f32.mrf.mxu0
    %v1290 = vadd.f32 %v1115, %v1289
    %v1291 = vpop.f32.mrf.mxu0
    %1292 = vdwg.mxu0
    %v1293 = vld [vmem:[#allocation10] sm:$0xf]
    %v1294 = vld [vmem:[#allocation10 + $0x4] sm:$0xf]
    %v1295 = vld [vmem:[#allocation10 + $0x8] sm:$0xf]
    %v1296 = vld [vmem:[#allocation10 + $0xc] sm:$0xf]
    %v1297 = vld [vmem:[#allocation10 + $0x10] sm:$0xf]
    %v1298 = vld [vmem:[#allocation10 + $0x14] sm:$0xf]
    %v1299 = vld [vmem:[#allocation10 + $0x18] sm:$0xf]
    %v1300 = vld [vmem:[#allocation10 + $0x1c] sm:$0xf]
    %v1301 = vld [vmem:[#allocation10 + $0x20] sm:$0xf]
    %v1302 = vld [vmem:[#allocation10 + $0x24] sm:$0xf]
    %v1303 = vld [vmem:[#allocation10 + $0x28] sm:$0xf]
    %v1304 = vld [vmem:[#allocation10 + $0x2c] sm:$0xf]
    %v1305 = vld [vmem:[#allocation10 + $0x30] sm:$0xf]
    %v1306 = vld [vmem:[#allocation10 + $0x34] sm:$0xf]
    %v1307 = vld [vmem:[#allocation10 + $0x38] sm:$0xf]
    %v1308 = vld [vmem:[#allocation10 + $0x3c] sm:$0xf]
    %v1309 = vpack.c.bf16 %v1170, %v1167
    %v1310 = vpack.c.bf16 %v1178, %v1175
    %v1311 = vpack.c.bf16 %v1186, %v1183
    %v1312 = vpack.c.bf16 %v1194, %v1191
    %v1313 = vpack.c.bf16 %v1202, %v1199
    %v1314 = vpack.c.bf16 %v1210, %v1207
    %v1315 = vpack.c.bf16 %v1218, %v1215
    %v1316 = vpack.c.bf16 %v1226, %v1223
    %v1317 = vpack.c.bf16 %v1234, %v1231
    %v1318 = vpack.c.bf16 %v1242, %v1239
    %v1319 = vpack.c.bf16 %v1250, %v1247
    %v1320 = vpack.c.bf16 %v1258, %v1255
    %v1321 = vpack.c.bf16 %v1266, %v1263
    %v1322 = vpack.c.bf16 %v1274, %v1271
    %v1323 = vpack.c.bf16 %v1282, %v1279
    %v1324 = vpack.c.bf16 %v1290, %v1287
    %v1325 = vld [vmem:[#allocation11] sm:$0xf]
    %v1326 = vld [vmem:[#allocation11 + $0x4] sm:$0xf]
    %v1327 = vld [vmem:[#allocation11 + $0x8] sm:$0xf]
    %v1328 = vld [vmem:[#allocation11 + $0xc] sm:$0xf]
    %v1329 = vld [vmem:[#allocation11 + $0x10] sm:$0xf]
    %v1330 = vld [vmem:[#allocation11 + $0x14] sm:$0xf]
    %v1331 = vld [vmem:[#allocation11 + $0x18] sm:$0xf]
    %v1332 = vld [vmem:[#allocation11 + $0x1c] sm:$0xf]
    %v1333 = vld [vmem:[#allocation11 + $0x20] sm:$0xf]
    %v1334 = vld [vmem:[#allocation11 + $0x24] sm:$0xf]
    %v1335 = vld [vmem:[#allocation11 + $0x28] sm:$0xf]
    %v1336 = vld [vmem:[#allocation11 + $0x2c] sm:$0xf]
    %v1337 = vld [vmem:[#allocation11 + $0x30] sm:$0xf]
    %v1338 = vld [vmem:[#allocation11 + $0x34] sm:$0xf]
    %v1339 = vld [vmem:[#allocation11 + $0x38] sm:$0xf]
    %v1340 = vld [vmem:[#allocation11 + $0x3c] sm:$0xf]
    %v1357 = vunpack.c.l.b16 %v1325
    %v1358 = vunpack.c.l.b16 %v1326
    %v1359 = vunpack.c.l.b16 %v1327
    %v1360 = vunpack.c.l.b16 %v1328
    %v1361 = vunpack.c.l.b16 %v1329
    %v1362 = vunpack.c.l.b16 %v1330
    %v1363 = vunpack.c.l.b16 %v1331
    %v1364 = vunpack.c.l.b16 %v1332
    %v1365 = vunpack.c.l.b16 %v1333
    %v1366 = vunpack.c.l.b16 %v1334
    %v1367 = vunpack.c.l.b16 %v1335
    %v1368 = vunpack.c.l.b16 %v1336
    %v1369 = vunpack.c.l.b16 %v1337
    %v1370 = vunpack.c.l.b16 %v1338
    %v1371 = vunpack.c.l.b16 %v1339
    %v1372 = vunpack.c.l.b16 %v1340
    %v1373 = vpack.c.b16 %v1358, %v1357
    %v1374 = vpack.c.b16 %v1360, %v1359
    %v1375 = vpack.c.b16 %v1362, %v1361
    %v1376 = vpack.c.b16 %v1364, %v1363
    %v1377 = vpack.c.b16 %v1366, %v1365
    %v1378 = vpack.c.b16 %v1368, %v1367
    %v1379 = vpack.c.b16 %v1370, %v1369
    %v1380 = vpack.c.b16 %v1372, %v1371
    %1389 = vmatprep.subr.bf16.mxu0 0
    %1390 = vmatpush1.bf16.msra.mxu0 %v1380
    %1391 = vmatprep.subr.bf16.mxu0 0
    %1392 = vmatpush1.bf16.msra.mxu0 %v1379
    %1393 = vmatprep.subr.bf16.mxu0 0
    %1394 = vmatpush1.bf16.msra.mxu0 %v1378
    %1395 = vmatprep.subr.bf16.mxu0 0
    %1396 = vmatpush1.bf16.msra.mxu0 %v1377
    %1397 = vmatprep.subr.bf16.mxu0 0
    %1398 = vmatpush1.bf16.msra.mxu0 %v1376
    %1399 = vmatprep.subr.bf16.mxu0 0
    %1400 = vmatpush1.bf16.msra.mxu0 %v1375
    %1401 = vmatprep.subr.bf16.mxu0 0
    %1402 = vmatpush1.bf16.msra.mxu0 %v1374
    %1403 = vmatprep.subr.bf16.mxu0 0
    %1404 = vmatpush1.bf16.msra.mxu0 %v1373
    %1405 = vmatprep.subr.bf16.mxu0 0
    %1406 = vmatpush2.bf16.msra.mxu0 0
    %1407 = vmatprep.subr.bf16.mxu0 0
    %1408 = vmatpush2.bf16.msra.mxu0 0
    %1409 = vmatprep.subr.bf16.mxu0 0
    %1410 = vmatpush2.bf16.msra.mxu0 0
    %1411 = vmatprep.subr.bf16.mxu0 0
    %1412 = vmatpush2.bf16.msra.mxu0 0
    %1413 = vmatprep.subr.bf16.mxu0 0
    %1414 = vmatpush2.bf16.msra.mxu0 0
    %1415 = vmatprep.subr.bf16.mxu0 0
    %1416 = vmatpush2.bf16.msra.mxu0 0
    %1417 = vmatprep.subr.bf16.mxu0 0
    %1418 = vmatpush2.bf16.msra.mxu0 0
    %1419 = vmatprep.subr.bf16.mxu0 0
    %1420 = vmatpush2.bf16.msra.mxu0 0
    %1421 = vmatprep.mubr.bf16.mxu0 0
    %1422 = vmatmul.mubr.bf16.gmra.mxu0 %v1309
    %v1423 = vpop.f32.mrf.mxu0
    %v1424 = vadd.f32 0.0, %v1423
    %v1425 = vpop.f32.mrf.mxu0
    %v1426 = vpop.f32.mrf.mxu0
    %v1427 = vadd.f32 0.0, %v1426
    %v1428 = vpop.f32.mrf.mxu0
    %1429 = vmatprep.mubr.bf16.mxu0 0
    %1430 = vmatmul.mubr.bf16.gmra.mxu0 %v1310
    %v1431 = vpop.f32.mrf.mxu0
    %v1432 = vadd.f32 0.0, %v1431
    %v1433 = vpop.f32.mrf.mxu0
    %v1434 = vpop.f32.mrf.mxu0
    %v1435 = vadd.f32 0.0, %v1434
    %v1436 = vpop.f32.mrf.mxu0
    %1437 = vmatprep.mubr.bf16.mxu0 0
    %1438 = vmatmul.mubr.bf16.gmra.mxu0 %v1311
    %v1439 = vpop.f32.mrf.mxu0
    %v1440 = vadd.f32 0.0, %v1439
    %v1441 = vpop.f32.mrf.mxu0
    %v1442 = vpop.f32.mrf.mxu0
    %v1443 = vadd.f32 0.0, %v1442
    %v1444 = vpop.f32.mrf.mxu0
    %1445 = vmatprep.mubr.bf16.mxu0 0
    %1446 = vmatmul.mubr.bf16.gmra.mxu0 %v1312
    %v1447 = vpop.f32.mrf.mxu0
    %v1448 = vadd.f32 0.0, %v1447
    %v1449 = vpop.f32.mrf.mxu0
    %v1450 = vpop.f32.mrf.mxu0
    %v1451 = vadd.f32 0.0, %v1450
    %v1452 = vpop.f32.mrf.mxu0
    %1453 = vmatprep.mubr.bf16.mxu0 0
    %1454 = vmatmul.mubr.bf16.gmra.mxu0 %v1313
    %v1455 = vpop.f32.mrf.mxu0
    %v1456 = vadd.f32 0.0, %v1455
    %v1457 = vpop.f32.mrf.mxu0
    %v1458 = vpop.f32.mrf.mxu0
    %v1459 = vadd.f32 0.0, %v1458
    %v1460 = vpop.f32.mrf.mxu0
    %1461 = vmatprep.mubr.bf16.mxu0 0
    %1462 = vmatmul.mubr.bf16.gmra.mxu0 %v1314
    %v1463 = vpop.f32.mrf.mxu0
    %v1464 = vadd.f32 0.0, %v1463
    %v1465 = vpop.f32.mrf.mxu0
    %v1466 = vpop.f32.mrf.mxu0
    %v1467 = vadd.f32 0.0, %v1466
    %v1468 = vpop.f32.mrf.mxu0
    %1469 = vmatprep.mubr.bf16.mxu0 0
    %1470 = vmatmul.mubr.bf16.gmra.mxu0 %v1315
    %v1471 = vpop.f32.mrf.mxu0
    %v1472 = vadd.f32 0.0, %v1471
    %v1473 = vpop.f32.mrf.mxu0
    %v1474 = vpop.f32.mrf.mxu0
    %v1475 = vadd.f32 0.0, %v1474
    %v1476 = vpop.f32.mrf.mxu0
    %1477 = vmatprep.mubr.bf16.mxu0 0
    %1478 = vmatmul.mubr.bf16.gmra.mxu0 %v1316
    %v1479 = vpop.f32.mrf.mxu0
    %v1480 = vadd.f32 0.0, %v1479
    %v1481 = vpop.f32.mrf.mxu0
    %v1482 = vpop.f32.mrf.mxu0
    %v1483 = vadd.f32 0.0, %v1482
    %v1484 = vpop.f32.mrf.mxu0
    %1485 = vmatprep.mubr.bf16.mxu0 0
    %1486 = vmatmul.mubr.bf16.gmra.mxu0 %v1317
    %v1487 = vpop.f32.mrf.mxu0
    %v1488 = vadd.f32 0.0, %v1487
    %v1489 = vpop.f32.mrf.mxu0
    %v1490 = vpop.f32.mrf.mxu0
    %v1491 = vadd.f32 0.0, %v1490
    %v1492 = vpop.f32.mrf.mxu0
    %1493 = vmatprep.mubr.bf16.mxu0 0
    %1494 = vmatmul.mubr.bf16.gmra.mxu0 %v1318
    %v1495 = vpop.f32.mrf.mxu0
    %v1496 = vadd.f32 0.0, %v1495
    %v1497 = vpop.f32.mrf.mxu0
    %v1498 = vpop.f32.mrf.mxu0
    %v1499 = vadd.f32 0.0, %v1498
    %v1500 = vpop.f32.mrf.mxu0
    %1501 = vmatprep.mubr.bf16.mxu0 0
    %1502 = vmatmul.mubr.bf16.gmra.mxu0 %v1319
    %v1503 = vpop.f32.mrf.mxu0
    %v1504 = vadd.f32 0.0, %v1503
    %v1505 = vpop.f32.mrf.mxu0
    %v1506 = vpop.f32.mrf.mxu0
    %v1507 = vadd.f32 0.0, %v1506
    %v1508 = vpop.f32.mrf.mxu0
    %1509 = vmatprep.mubr.bf16.mxu0 0
    %1510 = vmatmul.mubr.bf16.gmra.mxu0 %v1320
    %v1511 = vpop.f32.mrf.mxu0
    %v1512 = vadd.f32 0.0, %v1511
    %v1513 = vpop.f32.mrf.mxu0
    %v1514 = vpop.f32.mrf.mxu0
    %v1515 = vadd.f32 0.0, %v1514
    %v1516 = vpop.f32.mrf.mxu0
    %1517 = vmatprep.mubr.bf16.mxu0 0
    %1518 = vmatmul.mubr.bf16.gmra.mxu0 %v1321
    %v1519 = vpop.f32.mrf.mxu0
    %v1520 = vadd.f32 0.0, %v1519
    %v1521 = vpop.f32.mrf.mxu0
    %v1522 = vpop.f32.mrf.mxu0
    %v1523 = vadd.f32 0.0, %v1522
    %v1524 = vpop.f32.mrf.mxu0
    %1525 = vmatprep.mubr.bf16.mxu0 0
    %1526 = vmatmul.mubr.bf16.gmra.mxu0 %v1322
    %v1527 = vpop.f32.mrf.mxu0
    %v1528 = vadd.f32 0.0, %v1527
    %v1529 = vpop.f32.mrf.mxu0
    %v1530 = vpop.f32.mrf.mxu0
    %v1531 = vadd.f32 0.0, %v1530
    %v1532 = vpop.f32.mrf.mxu0
    %1533 = vmatprep.mubr.bf16.mxu0 0
    %1534 = vmatmul.mubr.bf16.gmra.mxu0 %v1323
    %v1535 = vpop.f32.mrf.mxu0
    %v1536 = vadd.f32 0.0, %v1535
    %v1537 = vpop.f32.mrf.mxu0
    %v1538 = vpop.f32.mrf.mxu0
    %v1539 = vadd.f32 0.0, %v1538
    %v1540 = vpop.f32.mrf.mxu0
    %1541 = vmatprep.mubr.bf16.mxu0 0
    %1542 = vmatmul.mubr.bf16.gmra.mxu0 %v1324
    %v1543 = vpop.f32.mrf.mxu0
    %v1544 = vadd.f32 0.0, %v1543
    %v1545 = vpop.f32.mrf.mxu0
    %v1546 = vpop.f32.mrf.mxu0
    %v1547 = vadd.f32 0.0, %v1546
    %v1548 = vpop.f32.mrf.mxu0
    %1549 = vdwg.mxu0
    %v1566 = vunpack.c.l.b16 %v1293
    %v1567 = vunpack.c.l.b16 %v1294
    %v1568 = vunpack.c.l.b16 %v1295
    %v1569 = vunpack.c.l.b16 %v1296
    %v1570 = vunpack.c.l.b16 %v1297
    %v1571 = vunpack.c.l.b16 %v1298
    %v1572 = vunpack.c.l.b16 %v1299
    %v1573 = vunpack.c.l.b16 %v1300
    %v1574 = vunpack.c.l.b16 %v1301
    %v1575 = vunpack.c.l.b16 %v1302
    %v1576 = vunpack.c.l.b16 %v1303
    %v1577 = vunpack.c.l.b16 %v1304
    %v1578 = vunpack.c.l.b16 %v1305
    %v1579 = vunpack.c.l.b16 %v1306
    %v1580 = vunpack.c.l.b16 %v1307
    %v1581 = vunpack.c.l.b16 %v1308
    %v1582 = vpack.c.b16 %v1567, %v1566
    %v1583 = vpack.c.b16 %v1569, %v1568
    %v1584 = vpack.c.b16 %v1571, %v1570
    %v1585 = vpack.c.b16 %v1573, %v1572
    %v1586 = vpack.c.b16 %v1575, %v1574
    %v1587 = vpack.c.b16 %v1577, %v1576
    %v1588 = vpack.c.b16 %v1579, %v1578
    %v1589 = vpack.c.b16 %v1581, %v1580
    %1598 = vmatprep.subr.bf16.mxu0 0
    %1599 = vmatpush1.bf16.msra.mxu0 %v1589
    %1600 = vmatprep.subr.bf16.mxu0 0
    %1601 = vmatpush1.bf16.msra.mxu0 %v1588
    %1602 = vmatprep.subr.bf16.mxu0 0
    %1603 = vmatpush1.bf16.msra.mxu0 %v1587
    %1604 = vmatprep.subr.bf16.mxu0 0
    %1605 = vmatpush1.bf16.msra.mxu0 %v1586
    %1606 = vmatprep.subr.bf16.mxu0 0
    %1607 = vmatpush1.bf16.msra.mxu0 %v1585
    %1608 = vmatprep.subr.bf16.mxu0 0
    %1609 = vmatpush1.bf16.msra.mxu0 %v1584
    %1610 = vmatprep.subr.bf16.mxu0 0
    %1611 = vmatpush1.bf16.msra.mxu0 %v1583
    %1612 = vmatprep.subr.bf16.mxu0 0
    %1613 = vmatpush1.bf16.msra.mxu0 %v1582
    %1614 = vmatprep.subr.bf16.mxu0 0
    %1615 = vmatpush2.bf16.msra.mxu0 0
    %1616 = vmatprep.subr.bf16.mxu0 0
    %1617 = vmatpush2.bf16.msra.mxu0 0
    %1618 = vmatprep.subr.bf16.mxu0 0
    %1619 = vmatpush2.bf16.msra.mxu0 0
    %1620 = vmatprep.subr.bf16.mxu0 0
    %1621 = vmatpush2.bf16.msra.mxu0 0
    %1622 = vmatprep.subr.bf16.mxu0 0
    %1623 = vmatpush2.bf16.msra.mxu0 0
    %1624 = vmatprep.subr.bf16.mxu0 0
    %1625 = vmatpush2.bf16.msra.mxu0 0
    %1626 = vmatprep.subr.bf16.mxu0 0
    %1627 = vmatpush2.bf16.msra.mxu0 0
    %1628 = vmatprep.subr.bf16.mxu0 0
    %1629 = vmatpush2.bf16.msra.mxu0 0
    %1630 = vmatprep.mubr.bf16.mxu0 0
    %1631 = vmatmul.mubr.bf16.gmra.mxu0 %v556
    %v1632 = vpop.f32.mrf.mxu0
    %v1633 = vadd.f32 %v1424, %v1632
    %v1634 = vpop.f32.mrf.mxu0
    %v1635 = vpop.f32.mrf.mxu0
    %v1636 = vadd.f32 %v1427, %v1635
    %v1637 = vpop.f32.mrf.mxu0
    %1638 = vmatprep.mubr.bf16.mxu0 0
    %1639 = vmatmul.mubr.bf16.gmra.mxu0 %v557
    %v1640 = vpop.f32.mrf.mxu0
    %v1641 = vadd.f32 %v1432, %v1640
    %v1642 = vpop.f32.mrf.mxu0
    %v1643 = vpop.f32.mrf.mxu0
    %v1644 = vadd.f32 %v1435, %v1643
    %v1645 = vpop.f32.mrf.mxu0
    %1646 = vmatprep.mubr.bf16.mxu0 0
    %1647 = vmatmul.mubr.bf16.gmra.mxu0 %v558
    %v1648 = vpop.f32.mrf.mxu0
    %v1649 = vadd.f32 %v1440, %v1648
    %v1650 = vpop.f32.mrf.mxu0
    %v1651 = vpop.f32.mrf.mxu0
    %v1652 = vadd.f32 %v1443, %v1651
    %v1653 = vpop.f32.mrf.mxu0
    %1654 = vmatprep.mubr.bf16.mxu0 0
    %1655 = vmatmul.mubr.bf16.gmra.mxu0 %v559
    %v1656 = vpop.f32.mrf.mxu0
    %v1657 = vadd.f32 %v1448, %v1656
    %v1658 = vpop.f32.mrf.mxu0
    %v1659 = vpop.f32.mrf.mxu0
    %v1660 = vadd.f32 %v1451, %v1659
    %v1661 = vpop.f32.mrf.mxu0
    %1662 = vmatprep.mubr.bf16.mxu0 0
    %1663 = vmatmul.mubr.bf16.gmra.mxu0 %v560
    %v1664 = vpop.f32.mrf.mxu0
    %v1665 = vadd.f32 %v1456, %v1664
    %v1666 = vpop.f32.mrf.mxu0
    %v1667 = vpop.f32.mrf.mxu0
    %v1668 = vadd.f32 %v1459, %v1667
    %v1669 = vpop.f32.mrf.mxu0
    %1670 = vmatprep.mubr.bf16.mxu0 0
    %1671 = vmatmul.mubr.bf16.gmra.mxu0 %v561
    %v1672 = vpop.f32.mrf.mxu0
    %v1673 = vadd.f32 %v1464, %v1672
    %v1674 = vpop.f32.mrf.mxu0
    %v1675 = vpop.f32.mrf.mxu0
    %v1676 = vadd.f32 %v1467, %v1675
    %v1677 = vpop.f32.mrf.mxu0
    %1678 = vmatprep.mubr.bf16.mxu0 0
    %1679 = vmatmul.mubr.bf16.gmra.mxu0 %v562
    %v1680 = vpop.f32.mrf.mxu0
    %v1681 = vadd.f32 %v1472, %v1680
    %v1682 = vpop.f32.mrf.mxu0
    %v1683 = vpop.f32.mrf.mxu0
    %v1684 = vadd.f32 %v1475, %v1683
    %v1685 = vpop.f32.mrf.mxu0
    %1686 = vmatprep.mubr.bf16.mxu0 0
    %1687 = vmatmul.mubr.bf16.gmra.mxu0 %v563
    %v1688 = vpop.f32.mrf.mxu0
    %v1689 = vadd.f32 %v1480, %v1688
    %v1690 = vpop.f32.mrf.mxu0
    %v1691 = vpop.f32.mrf.mxu0
    %v1692 = vadd.f32 %v1483, %v1691
    %v1693 = vpop.f32.mrf.mxu0
    %1694 = vmatprep.mubr.bf16.mxu0 0
    %1695 = vmatmul.mubr.bf16.gmra.mxu0 %v564
    %v1696 = vpop.f32.mrf.mxu0
    %v1697 = vadd.f32 %v1488, %v1696
    %v1698 = vpop.f32.mrf.mxu0
    %v1699 = vpop.f32.mrf.mxu0
    %v1700 = vadd.f32 %v1491, %v1699
    %v1701 = vpop.f32.mrf.mxu0
    %1702 = vmatprep.mubr.bf16.mxu0 0
    %1703 = vmatmul.mubr.bf16.gmra.mxu0 %v565
    %v1704 = vpop.f32.mrf.mxu0
    %v1705 = vadd.f32 %v1496, %v1704
    %v1706 = vpop.f32.mrf.mxu0
    %v1707 = vpop.f32.mrf.mxu0
    %v1708 = vadd.f32 %v1499, %v1707
    %v1709 = vpop.f32.mrf.mxu0
    %1710 = vmatprep.mubr.bf16.mxu0 0
    %1711 = vmatmul.mubr.bf16.gmra.mxu0 %v566
    %v1712 = vpop.f32.mrf.mxu0
    %v1713 = vadd.f32 %v1504, %v1712
    %v1714 = vpop.f32.mrf.mxu0
    %v1715 = vpop.f32.mrf.mxu0
    %v1716 = vadd.f32 %v1507, %v1715
    %v1717 = vpop.f32.mrf.mxu0
    %1718 = vmatprep.mubr.bf16.mxu0 0
    %1719 = vmatmul.mubr.bf16.gmra.mxu0 %v567
    %v1720 = vpop.f32.mrf.mxu0
    %v1721 = vadd.f32 %v1512, %v1720
    %v1722 = vpop.f32.mrf.mxu0
    %v1723 = vpop.f32.mrf.mxu0
    %v1724 = vadd.f32 %v1515, %v1723
    %v1725 = vpop.f32.mrf.mxu0
    %1726 = vmatprep.mubr.bf16.mxu0 0
    %1727 = vmatmul.mubr.bf16.gmra.mxu0 %v568
    %v1728 = vpop.f32.mrf.mxu0
    %v1729 = vadd.f32 %v1520, %v1728
    %v1730 = vpop.f32.mrf.mxu0
    %v1731 = vpop.f32.mrf.mxu0
    %v1732 = vadd.f32 %v1523, %v1731
    %v1733 = vpop.f32.mrf.mxu0
    %1734 = vmatprep.mubr.bf16.mxu0 0
    %1735 = vmatmul.mubr.bf16.gmra.mxu0 %v569
    %v1736 = vpop.f32.mrf.mxu0
    %v1737 = vadd.f32 %v1528, %v1736
    %v1738 = vpop.f32.mrf.mxu0
    %v1739 = vpop.f32.mrf.mxu0
    %v1740 = vadd.f32 %v1531, %v1739
    %v1741 = vpop.f32.mrf.mxu0
    %1742 = vmatprep.mubr.bf16.mxu0 0
    %1743 = vmatmul.mubr.bf16.gmra.mxu0 %v570
    %v1744 = vpop.f32.mrf.mxu0
    %v1745 = vadd.f32 %v1536, %v1744
    %v1746 = vpop.f32.mrf.mxu0
    %v1747 = vpop.f32.mrf.mxu0
    %v1748 = vadd.f32 %v1539, %v1747
    %v1749 = vpop.f32.mrf.mxu0
    %1750 = vmatprep.mubr.bf16.mxu0 0
    %1751 = vmatmul.mubr.bf16.gmra.mxu0 %v571
    %v1752 = vpop.f32.mrf.mxu0
    %v1753 = vadd.f32 %v1544, %v1752
    %v1754 = vpop.f32.mrf.mxu0
    %v1755 = vpop.f32.mrf.mxu0
    %v1756 = vadd.f32 %v1547, %v1755
    %v1757 = vpop.f32.mrf.mxu0
    %1758 = vdwg.mxu0
    %v1759 = vld [vmem:[%s8] sm:$0x1]
    %v1761 = vlaneseq
    %v1762 = vshrl.u32 %v1761, 7
    %v1763 = vsub.s32 0, %v1762
    %v1764 = vrot.slane %v1759, %v1763
    %v1766 = vadd.f32 %v1633, %v1764
    %v1767 = vadd.f32 %v1636, %v1764
    %v1768 = vadd.f32 %v1641, %v1764
    %v1769 = vadd.f32 %v1644, %v1764
    %v1770 = vadd.f32 %v1649, %v1764
    %v1771 = vadd.f32 %v1652, %v1764
    %v1772 = vadd.f32 %v1657, %v1764
    %v1773 = vadd.f32 %v1660, %v1764
    %v1774 = vadd.f32 %v1665, %v1764
    %v1775 = vadd.f32 %v1668, %v1764
    %v1776 = vadd.f32 %v1673, %v1764
    %v1777 = vadd.f32 %v1676, %v1764
    %v1778 = vadd.f32 %v1681, %v1764
    %v1779 = vadd.f32 %v1684, %v1764
    %v1780 = vadd.f32 %v1689, %v1764
    %v1781 = vadd.f32 %v1692, %v1764
    %v1782 = vadd.f32 %v1697, %v1764
    %v1783 = vadd.f32 %v1700, %v1764
    %v1784 = vadd.f32 %v1705, %v1764
    %v1785 = vadd.f32 %v1708, %v1764
    %v1786 = vadd.f32 %v1713, %v1764
    %v1787 = vadd.f32 %v1716, %v1764
    %v1788 = vadd.f32 %v1721, %v1764
    %v1789 = vadd.f32 %v1724, %v1764
    %v1790 = vadd.f32 %v1729, %v1764
    %v1791 = vadd.f32 %v1732, %v1764
    %v1792 = vadd.f32 %v1737, %v1764
    %v1793 = vadd.f32 %v1740, %v1764
    %v1794 = vadd.f32 %v1745, %v1764
    %v1795 = vadd.f32 %v1748, %v1764
    %v1796 = vadd.f32 %v1753, %v1764
    %v1797 = vadd.f32 %v1756, %v1764
    %v1798 = vmax.f32 %v1766, 0.0
    %v1799 = vmax.f32 %v1767, 0.0
    %v1800 = vmax.f32 %v1768, 0.0
    %v1801 = vmax.f32 %v1769, 0.0
    %v1802 = vmax.f32 %v1770, 0.0
    %v1803 = vmax.f32 %v1771, 0.0
    %v1804 = vmax.f32 %v1772, 0.0
    %v1805 = vmax.f32 %v1773, 0.0
    %v1806 = vmax.f32 %v1774, 0.0
    %v1807 = vmax.f32 %v1775, 0.0
    %v1808 = vmax.f32 %v1776, 0.0
    %v1809 = vmax.f32 %v1777, 0.0
    %v1810 = vmax.f32 %v1778, 0.0
    %v1811 = vmax.f32 %v1779, 0.0
    %v1812 = vmax.f32 %v1780, 0.0
    %v1813 = vmax.f32 %v1781, 0.0
    %v1814 = vmax.f32 %v1782, 0.0
    %v1815 = vmax.f32 %v1783, 0.0
    %v1816 = vmax.f32 %v1784, 0.0
    %v1817 = vmax.f32 %v1785, 0.0
    %v1818 = vmax.f32 %v1786, 0.0
    %v1819 = vmax.f32 %v1787, 0.0
    %v1820 = vmax.f32 %v1788, 0.0
    %v1821 = vmax.f32 %v1789, 0.0
    %v1822 = vmax.f32 %v1790, 0.0
    %v1823 = vmax.f32 %v1791, 0.0
    %v1824 = vmax.f32 %v1792, 0.0
    %v1825 = vmax.f32 %v1793, 0.0
    %v1826 = vmax.f32 %v1794, 0.0
    %v1827 = vmax.f32 %v1795, 0.0
    %v1828 = vmax.f32 %v1796, 0.0
    %v1829 = vmax.f32 %v1797, 0.0
    %v1830 = vpack.c.bf16 %v1799, %v1798
    %v1831 = vpack.c.bf16 %v1801, %v1800
    %v1832 = vpack.c.bf16 %v1803, %v1802
    %v1833 = vpack.c.bf16 %v1805, %v1804
    %v1834 = vpack.c.bf16 %v1807, %v1806
    %v1835 = vpack.c.bf16 %v1809, %v1808
    %v1836 = vpack.c.bf16 %v1811, %v1810
    %v1837 = vpack.c.bf16 %v1813, %v1812
    %v1838 = vpack.c.bf16 %v1815, %v1814
    %v1839 = vpack.c.bf16 %v1817, %v1816
    %v1840 = vpack.c.bf16 %v1819, %v1818
    %v1841 = vpack.c.bf16 %v1821, %v1820
    %v1842 = vpack.c.bf16 %v1823, %v1822
    %v1843 = vpack.c.bf16 %v1825, %v1824
    %v1844 = vpack.c.bf16 %v1827, %v1826
    %v1845 = vpack.c.bf16 %v1829, %v1828
    %v1846 = vld [vmem:[#allocation13] sm:$0xf]
    %v1847 = vld [vmem:[#allocation13 + $0x4] sm:$0xf]
    %v1848 = vld [vmem:[#allocation13 + $0x8] sm:$0xf]
    %v1849 = vld [vmem:[#allocation13 + $0xc] sm:$0xf]
    %v1850 = vld [vmem:[#allocation13 + $0x10] sm:$0xf]
    %v1851 = vld [vmem:[#allocation13 + $0x14] sm:$0xf]
    %v1852 = vld [vmem:[#allocation13 + $0x18] sm:$0xf]
    %v1853 = vld [vmem:[#allocation13 + $0x1c] sm:$0xf]
    %v1854 = vld [vmem:[#allocation13 + $0x20] sm:$0xf]
    %v1855 = vld [vmem:[#allocation13 + $0x24] sm:$0xf]
    %v1856 = vld [vmem:[#allocation13 + $0x28] sm:$0xf]
    %v1857 = vld [vmem:[#allocation13 + $0x2c] sm:$0xf]
    %v1858 = vld [vmem:[#allocation13 + $0x30] sm:$0xf]
    %v1859 = vld [vmem:[#allocation13 + $0x34] sm:$0xf]
    %v1860 = vld [vmem:[#allocation13 + $0x38] sm:$0xf]
    %v1861 = vld [vmem:[#allocation13 + $0x3c] sm:$0xf]
    %v1862 = vld [vmem:[%s10] sm:$0x1]
    %v1864 = vlaneseq
    %v1865 = vshrl.u32 %v1864, 7
    %v1866 = vsub.s32 0, %v1865
    %v1867 = vrot.slane %v1862, %v1866
    %v1885 = vunpack.c.l.b16 %v1846
    %v1886 = vunpack.c.l.b16 %v1847
    %v1887 = vunpack.c.l.b16 %v1848
    %v1888 = vunpack.c.l.b16 %v1849
    %v1889 = vunpack.c.l.b16 %v1850
    %v1890 = vunpack.c.l.b16 %v1851
    %v1891 = vunpack.c.l.b16 %v1852
    %v1892 = vunpack.c.l.b16 %v1853
    %v1893 = vunpack.c.l.b16 %v1854
    %v1894 = vunpack.c.l.b16 %v1855
    %v1895 = vunpack.c.l.b16 %v1856
    %v1896 = vunpack.c.l.b16 %v1857
    %v1897 = vunpack.c.l.b16 %v1858
    %v1898 = vunpack.c.l.b16 %v1859
    %v1899 = vunpack.c.l.b16 %v1860
    %v1900 = vunpack.c.l.b16 %v1861
    %v1901 = vpack.c.b16 %v1886, %v1885
    %v1902 = vpack.c.b16 %v1888, %v1887
    %v1903 = vpack.c.b16 %v1890, %v1889
    %v1904 = vpack.c.b16 %v1892, %v1891
    %v1905 = vpack.c.b16 %v1894, %v1893
    %v1906 = vpack.c.b16 %v1896, %v1895
    %v1907 = vpack.c.b16 %v1898, %v1897
    %v1908 = vpack.c.b16 %v1900, %v1899
    %1917 = vmatprep.subr.bf16.mxu0 0
    %1918 = vmatpush1.bf16.msra.mxu0 %v1908
    %1919 = vmatprep.subr.bf16.mxu0 0
    %1920 = vmatpush1.bf16.msra.mxu0 %v1907
    %1921 = vmatprep.subr.bf16.mxu0 0
    %1922 = vmatpush1.bf16.msra.mxu0 %v1906
    %1923 = vmatprep.subr.bf16.mxu0 0
    %1924 = vmatpush1.bf16.msra.mxu0 %v1905
    %1925 = vmatprep.subr.bf16.mxu0 0
    %1926 = vmatpush1.bf16.msra.mxu0 %v1904
    %1927 = vmatprep.subr.bf16.mxu0 0
    %1928 = vmatpush1.bf16.msra.mxu0 %v1903
    %1929 = vmatprep.subr.bf16.mxu0 0
    %1930 = vmatpush1.bf16.msra.mxu0 %v1902
    %1931 = vmatprep.subr.bf16.mxu0 0
    %1932 = vmatpush1.bf16.msra.mxu0 %v1901
    %1933 = vmatprep.subr.bf16.mxu0 0
    %1934 = vmatpush2.bf16.msra.mxu0 0
    %1935 = vmatprep.subr.bf16.mxu0 0
    %1936 = vmatpush2.bf16.msra.mxu0 0
    %1937 = vmatprep.subr.bf16.mxu0 0
    %1938 = vmatpush2.bf16.msra.mxu0 0
    %1939 = vmatprep.subr.bf16.mxu0 0
    %1940 = vmatpush2.bf16.msra.mxu0 0
    %1941 = vmatprep.subr.bf16.mxu0 0
    %1942 = vmatpush2.bf16.msra.mxu0 0
    %1943 = vmatprep.subr.bf16.mxu0 0
    %1944 = vmatpush2.bf16.msra.mxu0 0
    %1945 = vmatprep.subr.bf16.mxu0 0
    %1946 = vmatpush2.bf16.msra.mxu0 0
    %1947 = vmatprep.subr.bf16.mxu0 0
    %1948 = vmatpush2.bf16.msra.mxu0 0
    %1949 = vmatprep.mubr.bf16.mxu0 0
    %1950 = vmatmul.mubr.bf16.gmra.mxu0 %v1830
    %v1951 = vpop.f32.mrf.mxu0
    %v1952 = vadd.f32 %v1867, %v1951
    %v1953 = vpop.f32.mrf.mxu0
    %v1954 = vpop.f32.mrf.mxu0
    %v1955 = vadd.f32 %v1867, %v1954
    %v1956 = vpop.f32.mrf.mxu0
    %1957 = vmatprep.mubr.bf16.mxu0 0
    %1958 = vmatmul.mubr.bf16.gmra.mxu0 %v1831
    %v1959 = vpop.f32.mrf.mxu0
    %v1960 = vadd.f32 %v1867, %v1959
    %v1961 = vpop.f32.mrf.mxu0
    %v1962 = vpop.f32.mrf.mxu0
    %v1963 = vadd.f32 %v1867, %v1962
    %v1964 = vpop.f32.mrf.mxu0
    %1965 = vmatprep.mubr.bf16.mxu0 0
    %1966 = vmatmul.mubr.bf16.gmra.mxu0 %v1832
    %v1967 = vpop.f32.mrf.mxu0
    %v1968 = vadd.f32 %v1867, %v1967
    %v1969 = vpop.f32.mrf.mxu0
    %v1970 = vpop.f32.mrf.mxu0
    %v1971 = vadd.f32 %v1867, %v1970
    %v1972 = vpop.f32.mrf.mxu0
    %1973 = vmatprep.mubr.bf16.mxu0 0
    %1974 = vmatmul.mubr.bf16.gmra.mxu0 %v1833
    %v1975 = vpop.f32.mrf.mxu0
    %v1976 = vadd.f32 %v1867, %v1975
    %v1977 = vpop.f32.mrf.mxu0
    %v1978 = vpop.f32.mrf.mxu0
    %v1979 = vadd.f32 %v1867, %v1978
    %v1980 = vpop.f32.mrf.mxu0
    %1981 = vmatprep.mubr.bf16.mxu0 0
    %1982 = vmatmul.mubr.bf16.gmra.mxu0 %v1834
    %v1983 = vpop.f32.mrf.mxu0
    %v1984 = vadd.f32 %v1867, %v1983
    %v1985 = vpop.f32.mrf.mxu0
    %v1986 = vpop.f32.mrf.mxu0
    %v1987 = vadd.f32 %v1867, %v1986
    %v1988 = vpop.f32.mrf.mxu0
    %1989 = vmatprep.mubr.bf16.mxu0 0
    %1990 = vmatmul.mubr.bf16.gmra.mxu0 %v1835
    %v1991 = vpop.f32.mrf.mxu0
    %v1992 = vadd.f32 %v1867, %v1991
    %v1993 = vpop.f32.mrf.mxu0
    %v1994 = vpop.f32.mrf.mxu0
    %v1995 = vadd.f32 %v1867, %v1994
    %v1996 = vpop.f32.mrf.mxu0
    %1997 = vmatprep.mubr.bf16.mxu0 0
    %1998 = vmatmul.mubr.bf16.gmra.mxu0 %v1836
    %v1999 = vpop.f32.mrf.mxu0
    %v2000 = vadd.f32 %v1867, %v1999
    %v2001 = vpop.f32.mrf.mxu0
    %v2002 = vpop.f32.mrf.mxu0
    %v2003 = vadd.f32 %v1867, %v2002
    %v2004 = vpop.f32.mrf.mxu0
    %2005 = vmatprep.mubr.bf16.mxu0 0
    %2006 = vmatmul.mubr.bf16.gmra.mxu0 %v1837
    %v2007 = vpop.f32.mrf.mxu0
    %v2008 = vadd.f32 %v1867, %v2007
    %v2009 = vpop.f32.mrf.mxu0
    %v2010 = vpop.f32.mrf.mxu0
    %v2011 = vadd.f32 %v1867, %v2010
    %v2012 = vpop.f32.mrf.mxu0
    %2013 = vmatprep.mubr.bf16.mxu0 0
    %2014 = vmatmul.mubr.bf16.gmra.mxu0 %v1838
    %v2015 = vpop.f32.mrf.mxu0
    %v2016 = vadd.f32 %v1867, %v2015
    %v2017 = vpop.f32.mrf.mxu0
    %v2018 = vpop.f32.mrf.mxu0
    %v2019 = vadd.f32 %v1867, %v2018
    %v2020 = vpop.f32.mrf.mxu0
    %2021 = vmatprep.mubr.bf16.mxu0 0
    %2022 = vmatmul.mubr.bf16.gmra.mxu0 %v1839
    %v2023 = vpop.f32.mrf.mxu0
    %v2024 = vadd.f32 %v1867, %v2023
    %v2025 = vpop.f32.mrf.mxu0
    %v2026 = vpop.f32.mrf.mxu0
    %v2027 = vadd.f32 %v1867, %v2026
    %v2028 = vpop.f32.mrf.mxu0
    %2029 = vmatprep.mubr.bf16.mxu0 0
    %2030 = vmatmul.mubr.bf16.gmra.mxu0 %v1840
    %v2031 = vpop.f32.mrf.mxu0
    %v2032 = vadd.f32 %v1867, %v2031
    %v2033 = vpop.f32.mrf.mxu0
    %v2034 = vpop.f32.mrf.mxu0
    %v2035 = vadd.f32 %v1867, %v2034
    %v2036 = vpop.f32.mrf.mxu0
    %2037 = vmatprep.mubr.bf16.mxu0 0
    %2038 = vmatmul.mubr.bf16.gmra.mxu0 %v1841
    %v2039 = vpop.f32.mrf.mxu0
    %v2040 = vadd.f32 %v1867, %v2039
    %v2041 = vpop.f32.mrf.mxu0
    %v2042 = vpop.f32.mrf.mxu0
    %v2043 = vadd.f32 %v1867, %v2042
    %v2044 = vpop.f32.mrf.mxu0
    %2045 = vmatprep.mubr.bf16.mxu0 0
    %2046 = vmatmul.mubr.bf16.gmra.mxu0 %v1842
    %v2047 = vpop.f32.mrf.mxu0
    %v2048 = vadd.f32 %v1867, %v2047
    %v2049 = vpop.f32.mrf.mxu0
    %v2050 = vpop.f32.mrf.mxu0
    %v2051 = vadd.f32 %v1867, %v2050
    %v2052 = vpop.f32.mrf.mxu0
    %2053 = vmatprep.mubr.bf16.mxu0 0
    %2054 = vmatmul.mubr.bf16.gmra.mxu0 %v1843
    %v2055 = vpop.f32.mrf.mxu0
    %v2056 = vadd.f32 %v1867, %v2055
    %v2057 = vpop.f32.mrf.mxu0
    %v2058 = vpop.f32.mrf.mxu0
    %v2059 = vadd.f32 %v1867, %v2058
    %v2060 = vpop.f32.mrf.mxu0
    %2061 = vmatprep.mubr.bf16.mxu0 0
    %2062 = vmatmul.mubr.bf16.gmra.mxu0 %v1844
    %v2063 = vpop.f32.mrf.mxu0
    %v2064 = vadd.f32 %v1867, %v2063
    %v2065 = vpop.f32.mrf.mxu0
    %v2066 = vpop.f32.mrf.mxu0
    %v2067 = vadd.f32 %v1867, %v2066
    %v2068 = vpop.f32.mrf.mxu0
    %2069 = vmatprep.mubr.bf16.mxu0 0
    %2070 = vmatmul.mubr.bf16.gmra.mxu0 %v1845
    %v2071 = vpop.f32.mrf.mxu0
    %v2072 = vadd.f32 %v1867, %v2071
    %v2073 = vpop.f32.mrf.mxu0
    %v2074 = vpop.f32.mrf.mxu0
    %v2075 = vadd.f32 %v1867, %v2074
    %v2076 = vpop.f32.mrf.mxu0
    %2077 = vdwg.mxu0
    %v2078 = vmax.f32 %v1952, 0.0
    %v2079 = vmax.f32 %v1955, 0.0
    %v2080 = vmax.f32 %v1960, 0.0
    %v2081 = vmax.f32 %v1963, 0.0
    %v2082 = vmax.f32 %v1968, 0.0
    %v2083 = vmax.f32 %v1971, 0.0
    %v2084 = vmax.f32 %v1976, 0.0
    %v2085 = vmax.f32 %v1979, 0.0
    %v2086 = vmax.f32 %v1984, 0.0
    %v2087 = vmax.f32 %v1987, 0.0
    %v2088 = vmax.f32 %v1992, 0.0
    %v2089 = vmax.f32 %v1995, 0.0
    %v2090 = vmax.f32 %v2000, 0.0
    %v2091 = vmax.f32 %v2003, 0.0
    %v2092 = vmax.f32 %v2008, 0.0
    %v2093 = vmax.f32 %v2011, 0.0
    %v2094 = vmax.f32 %v2016, 0.0
    %v2095 = vmax.f32 %v2019, 0.0
    %v2096 = vmax.f32 %v2024, 0.0
    %v2097 = vmax.f32 %v2027, 0.0
    %v2098 = vmax.f32 %v2032, 0.0
    %v2099 = vmax.f32 %v2035, 0.0
    %v2100 = vmax.f32 %v2040, 0.0
    %v2101 = vmax.f32 %v2043, 0.0
    %v2102 = vmax.f32 %v2048, 0.0
    %v2103 = vmax.f32 %v2051, 0.0
    %v2104 = vmax.f32 %v2056, 0.0
    %v2105 = vmax.f32 %v2059, 0.0
    %v2106 = vmax.f32 %v2064, 0.0
    %v2107 = vmax.f32 %v2067, 0.0
    %v2108 = vmax.f32 %v2072, 0.0
    %v2109 = vmax.f32 %v2075, 0.0
    %v2110 = vpack.c.bf16 %v2079, %v2078
    %v2111 = vpack.c.bf16 %v2081, %v2080
    %v2112 = vpack.c.bf16 %v2083, %v2082
    %v2113 = vpack.c.bf16 %v2085, %v2084
    %v2114 = vpack.c.bf16 %v2087, %v2086
    %v2115 = vpack.c.bf16 %v2089, %v2088
    %v2116 = vpack.c.bf16 %v2091, %v2090
    %v2117 = vpack.c.bf16 %v2093, %v2092
    %v2118 = vpack.c.bf16 %v2095, %v2094
    %v2119 = vpack.c.bf16 %v2097, %v2096
    %v2120 = vpack.c.bf16 %v2099, %v2098
    %v2121 = vpack.c.bf16 %v2101, %v2100
    %v2122 = vpack.c.bf16 %v2103, %v2102
    %v2123 = vpack.c.bf16 %v2105, %v2104
    %v2124 = vpack.c.bf16 %v2107, %v2106
    %v2125 = vpack.c.bf16 %v2109, %v2108
    %v2126 = vld [vmem:[#allocation14] sm:$0xf]
    %v2127 = vld [vmem:[#allocation14 + $0x4] sm:$0xf]
    %v2128 = vld [vmem:[#allocation14 + $0x8] sm:$0xf]
    %v2129 = vld [vmem:[#allocation14 + $0xc] sm:$0xf]
    %v2130 = vld [vmem:[#allocation14 + $0x10] sm:$0xf]
    %v2131 = vld [vmem:[#allocation14 + $0x14] sm:$0xf]
    %v2132 = vld [vmem:[#allocation14 + $0x18] sm:$0xf]
    %v2133 = vld [vmem:[#allocation14 + $0x1c] sm:$0xf]
    %v2134 = vld [vmem:[#allocation14 + $0x20] sm:$0xf]
    %v2135 = vld [vmem:[#allocation14 + $0x24] sm:$0xf]
    %v2136 = vld [vmem:[#allocation14 + $0x28] sm:$0xf]
    %v2137 = vld [vmem:[#allocation14 + $0x2c] sm:$0xf]
    %v2138 = vld [vmem:[#allocation14 + $0x30] sm:$0xf]
    %v2139 = vld [vmem:[#allocation14 + $0x34] sm:$0xf]
    %v2140 = vld [vmem:[#allocation14 + $0x38] sm:$0xf]
    %v2141 = vld [vmem:[#allocation14 + $0x3c] sm:$0xf]
    %v2142 = vld [vmem:[%s12] sm:$0x1]
    %v2144 = vlaneseq
    %v2145 = vshrl.u32 %v2144, 7
    %v2146 = vsub.s32 0, %v2145
    %v2147 = vrot.slane %v2142, %v2146
    %v2165 = vunpack.c.l.b16 %v2126
    %v2166 = vunpack.c.l.b16 %v2127
    %v2167 = vunpack.c.l.b16 %v2128
    %v2168 = vunpack.c.l.b16 %v2129
    %v2169 = vunpack.c.l.b16 %v2130
    %v2170 = vunpack.c.l.b16 %v2131
    %v2171 = vunpack.c.l.b16 %v2132
    %v2172 = vunpack.c.l.b16 %v2133
    %v2173 = vunpack.c.l.b16 %v2134
    %v2174 = vunpack.c.l.b16 %v2135
    %v2175 = vunpack.c.l.b16 %v2136
    %v2176 = vunpack.c.l.b16 %v2137
    %v2177 = vunpack.c.l.b16 %v2138
    %v2178 = vunpack.c.l.b16 %v2139
    %v2179 = vunpack.c.l.b16 %v2140
    %v2180 = vunpack.c.l.b16 %v2141
    %v2181 = vpack.c.b16 %v2166, %v2165
    %v2182 = vpack.c.b16 %v2168, %v2167
    %v2183 = vpack.c.b16 %v2170, %v2169
    %v2184 = vpack.c.b16 %v2172, %v2171
    %v2185 = vpack.c.b16 %v2174, %v2173
    %v2186 = vpack.c.b16 %v2176, %v2175
    %v2187 = vpack.c.b16 %v2178, %v2177
    %v2188 = vpack.c.b16 %v2180, %v2179
    %2197 = vmatprep.subr.bf16.mxu0 0
    %2198 = vmatpush1.bf16.msra.mxu0 %v2188
    %2199 = vmatprep.subr.bf16.mxu0 0
    %2200 = vmatpush1.bf16.msra.mxu0 %v2187
    %2201 = vmatprep.subr.bf16.mxu0 0
    %2202 = vmatpush1.bf16.msra.mxu0 %v2186
    %2203 = vmatprep.subr.bf16.mxu0 0
    %2204 = vmatpush1.bf16.msra.mxu0 %v2185
    %2205 = vmatprep.subr.bf16.mxu0 0
    %2206 = vmatpush1.bf16.msra.mxu0 %v2184
    %2207 = vmatprep.subr.bf16.mxu0 0
    %2208 = vmatpush1.bf16.msra.mxu0 %v2183
    %2209 = vmatprep.subr.bf16.mxu0 0
    %2210 = vmatpush1.bf16.msra.mxu0 %v2182
    %2211 = vmatprep.subr.bf16.mxu0 0
    %2212 = vmatpush1.bf16.msra.mxu0 %v2181
    %2213 = vmatprep.subr.bf16.mxu0 0
    %2214 = vmatpush2.bf16.msra.mxu0 0
    %2215 = vmatprep.subr.bf16.mxu0 0
    %2216 = vmatpush2.bf16.msra.mxu0 0
    %2217 = vmatprep.subr.bf16.mxu0 0
    %2218 = vmatpush2.bf16.msra.mxu0 0
    %2219 = vmatprep.subr.bf16.mxu0 0
    %2220 = vmatpush2.bf16.msra.mxu0 0
    %2221 = vmatprep.subr.bf16.mxu0 0
    %2222 = vmatpush2.bf16.msra.mxu0 0
    %2223 = vmatprep.subr.bf16.mxu0 0
    %2224 = vmatpush2.bf16.msra.mxu0 0
    %2225 = vmatprep.subr.bf16.mxu0 0
    %2226 = vmatpush2.bf16.msra.mxu0 0
    %2227 = vmatprep.subr.bf16.mxu0 0
    %2228 = vmatpush2.bf16.msra.mxu0 0
    %2229 = vmatprep.mubr.bf16.mxu0 0
    %2230 = vmatmul.mubr.bf16.gmra.mxu0 %v2110
    %v2231 = vpop.f32.mrf.mxu0
    %v2232 = vadd.f32 %v2147, %v2231
    %v2233 = vpop.f32.mrf.mxu0
    %v2234 = vpop.f32.mrf.mxu0
    %v2235 = vadd.f32 %v2147, %v2234
    %v2236 = vpop.f32.mrf.mxu0
    %2237 = vmatprep.mubr.bf16.mxu0 0
    %2238 = vmatmul.mubr.bf16.gmra.mxu0 %v2111
    %v2239 = vpop.f32.mrf.mxu0
    %v2240 = vadd.f32 %v2147, %v2239
    %v2241 = vpop.f32.mrf.mxu0
    %v2242 = vpop.f32.mrf.mxu0
    %v2243 = vadd.f32 %v2147, %v2242
    %v2244 = vpop.f32.mrf.mxu0
    %2245 = vmatprep.mubr.bf16.mxu0 0
    %2246 = vmatmul.mubr.bf16.gmra.mxu0 %v2112
    %v2247 = vpop.f32.mrf.mxu0
    %v2248 = vadd.f32 %v2147, %v2247
    %v2249 = vpop.f32.mrf.mxu0
    %v2250 = vpop.f32.mrf.mxu0
    %v2251 = vadd.f32 %v2147, %v2250
    %v2252 = vpop.f32.mrf.mxu0
    %2253 = vmatprep.mubr.bf16.mxu0 0
    %2254 = vmatmul.mubr.bf16.gmra.mxu0 %v2113
    %v2255 = vpop.f32.mrf.mxu0
    %v2256 = vadd.f32 %v2147, %v2255
    %v2257 = vpop.f32.mrf.mxu0
    %v2258 = vpop.f32.mrf.mxu0
    %v2259 = vadd.f32 %v2147, %v2258
    %v2260 = vpop.f32.mrf.mxu0
    %2261 = vmatprep.mubr.bf16.mxu0 0
    %2262 = vmatmul.mubr.bf16.gmra.mxu0 %v2114
    %v2263 = vpop.f32.mrf.mxu0
    %v2264 = vadd.f32 %v2147, %v2263
    %v2265 = vpop.f32.mrf.mxu0
    %v2266 = vpop.f32.mrf.mxu0
    %v2267 = vadd.f32 %v2147, %v2266
    %v2268 = vpop.f32.mrf.mxu0
    %2269 = vmatprep.mubr.bf16.mxu0 0
    %2270 = vmatmul.mubr.bf16.gmra.mxu0 %v2115
    %v2271 = vpop.f32.mrf.mxu0
    %v2272 = vadd.f32 %v2147, %v2271
    %v2273 = vpop.f32.mrf.mxu0
    %v2274 = vpop.f32.mrf.mxu0
    %v2275 = vadd.f32 %v2147, %v2274
    %v2276 = vpop.f32.mrf.mxu0
    %2277 = vmatprep.mubr.bf16.mxu0 0
    %2278 = vmatmul.mubr.bf16.gmra.mxu0 %v2116
    %v2279 = vpop.f32.mrf.mxu0
    %v2280 = vadd.f32 %v2147, %v2279
    %v2281 = vpop.f32.mrf.mxu0
    %v2282 = vpop.f32.mrf.mxu0
    %v2283 = vadd.f32 %v2147, %v2282
    %v2284 = vpop.f32.mrf.mxu0
    %2285 = vmatprep.mubr.bf16.mxu0 0
    %2286 = vmatmul.mubr.bf16.gmra.mxu0 %v2117
    %v2287 = vpop.f32.mrf.mxu0
    %v2288 = vadd.f32 %v2147, %v2287
    %v2289 = vpop.f32.mrf.mxu0
    %v2290 = vpop.f32.mrf.mxu0
    %v2291 = vadd.f32 %v2147, %v2290
    %v2292 = vpop.f32.mrf.mxu0
    %2293 = vmatprep.mubr.bf16.mxu0 0
    %2294 = vmatmul.mubr.bf16.gmra.mxu0 %v2118
    %v2295 = vpop.f32.mrf.mxu0
    %v2296 = vadd.f32 %v2147, %v2295
    %v2297 = vpop.f32.mrf.mxu0
    %v2298 = vpop.f32.mrf.mxu0
    %v2299 = vadd.f32 %v2147, %v2298
    %v2300 = vpop.f32.mrf.mxu0
    %2301 = vmatprep.mubr.bf16.mxu0 0
    %2302 = vmatmul.mubr.bf16.gmra.mxu0 %v2119
    %v2303 = vpop.f32.mrf.mxu0
    %v2304 = vadd.f32 %v2147, %v2303
    %v2305 = vpop.f32.mrf.mxu0
    %v2306 = vpop.f32.mrf.mxu0
    %v2307 = vadd.f32 %v2147, %v2306
    %v2308 = vpop.f32.mrf.mxu0
    %2309 = vmatprep.mubr.bf16.mxu0 0
    %2310 = vmatmul.mubr.bf16.gmra.mxu0 %v2120
    %v2311 = vpop.f32.mrf.mxu0
    %v2312 = vadd.f32 %v2147, %v2311
    %v2313 = vpop.f32.mrf.mxu0
    %v2314 = vpop.f32.mrf.mxu0
    %v2315 = vadd.f32 %v2147, %v2314
    %v2316 = vpop.f32.mrf.mxu0
    %2317 = vmatprep.mubr.bf16.mxu0 0
    %2318 = vmatmul.mubr.bf16.gmra.mxu0 %v2121
    %v2319 = vpop.f32.mrf.mxu0
    %v2320 = vadd.f32 %v2147, %v2319
    %v2321 = vpop.f32.mrf.mxu0
    %v2322 = vpop.f32.mrf.mxu0
    %v2323 = vadd.f32 %v2147, %v2322
    %v2324 = vpop.f32.mrf.mxu0
    %2325 = vmatprep.mubr.bf16.mxu0 0
    %2326 = vmatmul.mubr.bf16.gmra.mxu0 %v2122
    %v2327 = vpop.f32.mrf.mxu0
    %v2328 = vadd.f32 %v2147, %v2327
    %v2329 = vpop.f32.mrf.mxu0
    %v2330 = vpop.f32.mrf.mxu0
    %v2331 = vadd.f32 %v2147, %v2330
    %v2332 = vpop.f32.mrf.mxu0
    %2333 = vmatprep.mubr.bf16.mxu0 0
    %2334 = vmatmul.mubr.bf16.gmra.mxu0 %v2123
    %v2335 = vpop.f32.mrf.mxu0
    %v2336 = vadd.f32 %v2147, %v2335
    %v2337 = vpop.f32.mrf.mxu0
    %v2338 = vpop.f32.mrf.mxu0
    %v2339 = vadd.f32 %v2147, %v2338
    %v2340 = vpop.f32.mrf.mxu0
    %2341 = vmatprep.mubr.bf16.mxu0 0
    %2342 = vmatmul.mubr.bf16.gmra.mxu0 %v2124
    %v2343 = vpop.f32.mrf.mxu0
    %v2344 = vadd.f32 %v2147, %v2343
    %v2345 = vpop.f32.mrf.mxu0
    %v2346 = vpop.f32.mrf.mxu0
    %v2347 = vadd.f32 %v2147, %v2346
    %v2348 = vpop.f32.mrf.mxu0
    %2349 = vmatprep.mubr.bf16.mxu0 0
    %2350 = vmatmul.mubr.bf16.gmra.mxu0 %v2125
    %v2351 = vpop.f32.mrf.mxu0
    %v2352 = vadd.f32 %v2147, %v2351
    %v2353 = vpop.f32.mrf.mxu0
    %v2354 = vpop.f32.mrf.mxu0
    %v2355 = vadd.f32 %v2147, %v2354
    %v2356 = vpop.f32.mrf.mxu0
    %2357 = vdwg.mxu0
    %v2358 = vmax.f32 %v2232, 0.0
    %v2359 = vmax.f32 %v2235, 0.0
    %v2360 = vmax.f32 %v2240, 0.0
    %v2361 = vmax.f32 %v2243, 0.0
    %v2362 = vmax.f32 %v2248, 0.0
    %v2363 = vmax.f32 %v2251, 0.0
    %v2364 = vmax.f32 %v2256, 0.0
    %v2365 = vmax.f32 %v2259, 0.0
    %v2366 = vmax.f32 %v2264, 0.0
    %v2367 = vmax.f32 %v2267, 0.0
    %v2368 = vmax.f32 %v2272, 0.0
    %v2369 = vmax.f32 %v2275, 0.0
    %v2370 = vmax.f32 %v2280, 0.0
    %v2371 = vmax.f32 %v2283, 0.0
    %v2372 = vmax.f32 %v2288, 0.0
    %v2373 = vmax.f32 %v2291, 0.0
    %v2374 = vmax.f32 %v2296, 0.0
    %v2375 = vmax.f32 %v2299, 0.0
    %v2376 = vmax.f32 %v2304, 0.0
    %v2377 = vmax.f32 %v2307, 0.0
    %v2378 = vmax.f32 %v2312, 0.0
    %v2379 = vmax.f32 %v2315, 0.0
    %v2380 = vmax.f32 %v2320, 0.0
    %v2381 = vmax.f32 %v2323, 0.0
    %v2382 = vmax.f32 %v2328, 0.0
    %v2383 = vmax.f32 %v2331, 0.0
    %v2384 = vmax.f32 %v2336, 0.0
    %v2385 = vmax.f32 %v2339, 0.0
    %v2386 = vmax.f32 %v2344, 0.0
    %v2387 = vmax.f32 %v2347, 0.0
    %v2388 = vmax.f32 %v2352, 0.0
    %v2389 = vmax.f32 %v2355, 0.0
    %2390 = vst [vmem:[#allocation16] sm:$0xff] %v2358
    %2391 = vst [vmem:[#allocation16 + $0x8] sm:$0xff] %v2359
    %2392 = vst [vmem:[#allocation16 + $0x10] sm:$0xff] %v2360
    %2393 = vst [vmem:[#allocation16 + $0x18] sm:$0xff] %v2361
    %2394 = vst [vmem:[#allocation16 + $0x20] sm:$0xff] %v2362
    %2395 = vst [vmem:[#allocation16 + $0x28] sm:$0xff] %v2363
    %2396 = vst [vmem:[#allocation16 + $0x30] sm:$0xff] %v2364
    %2397 = vst [vmem:[#allocation16 + $0x38] sm:$0xff] %v2365
    %2398 = vst [vmem:[#allocation16 + $0x40] sm:$0xff] %v2366
    %2399 = vst [vmem:[#allocation16 + $0x48] sm:$0xff] %v2367
    %2400 = vst [vmem:[#allocation16 + $0x50] sm:$0xff] %v2368
    %2401 = vst [vmem:[#allocation16 + $0x58] sm:$0xff] %v2369
    %2402 = vst [vmem:[#allocation16 + $0x60] sm:$0xff] %v2370
    %2403 = vst [vmem:[#allocation16 + $0x68] sm:$0xff] %v2371
    %2404 = vst [vmem:[#allocation16 + $0x70] sm:$0xff] %v2372
    %2405 = vst [vmem:[#allocation16 + $0x78] sm:$0xff] %v2373
    %2406 = vst [vmem:[#allocation16 + $0x80] sm:$0xff] %v2374
    %2407 = vst [vmem:[#allocation16 + $0x88] sm:$0xff] %v2375
    %2408 = vst [vmem:[#allocation16 + $0x90] sm:$0xff] %v2376
    %2409 = vst [vmem:[#allocation16 + $0x98] sm:$0xff] %v2377
    %2410 = vst [vmem:[#allocation16 + $0xa0] sm:$0xff] %v2378
    %2411 = vst [vmem:[#allocation16 + $0xa8] sm:$0xff] %v2379
    %2412 = vst [vmem:[#allocation16 + $0xb0] sm:$0xff] %v2380
    %2413 = vst [vmem:[#allocation16 + $0xb8] sm:$0xff] %v2381
    %2414 = vst [vmem:[#allocation16 + $0xc0] sm:$0xff] %v2382
    %2415 = vst [vmem:[#allocation16 + $0xc8] sm:$0xff] %v2383
    %2416 = vst [vmem:[#allocation16 + $0xd0] sm:$0xff] %v2384
    %2417 = vst [vmem:[#allocation16 + $0xd8] sm:$0xff] %v2385
    %2418 = vst [vmem:[#allocation16 + $0xe0] sm:$0xff] %v2386
    %2419 = vst [vmem:[#allocation16 + $0xe8] sm:$0xff] %v2387
    %2420 = vst [vmem:[#allocation16 + $0xf0] sm:$0xff] %v2388
    %2421 = vst [vmem:[#allocation16 + $0xf8] sm:$0xff] %v2389
    // Predicated region
    $region86: #{tpu_custom_call.1} parent=1 // pred_check
      _
    $region87: #{tpu_custom_call.1} parent=1 // pred_check_branch
      %2423 = sbr.rel (0) target = $region89
    $region88: #{tpu_custom_call.1} parent=1 // pred_region
      %s2425 = ssub.s32 4096, 4096
      %2426 = vsyncadd [#allocation4], %s2425
      %s2427 = sshll.u32 [#allocation16], 4
      %s2428 = int_to_ptr.vmem [resolvable:$true] %s2427
      %2433 = dma.vmem_to_hbm [thread:$0]  %s2428, 4096, %s13, [#allocation4], 128, 128, 8
    $region89: #{tpu_custom_call.1} parent=1 // pred_fallthru
      _
    // Predicated region
    $region90: #{tpu_custom_call.1} parent=1 // pred_check
      _
    $region91: #{tpu_custom_call.1} parent=1 // pred_check_branch
      %2435 = sbr.rel (0) target = $region93
    $region92: #{tpu_custom_call.1} parent=1 // pred_region
      %2436 = dma.done [#allocation4], 4096
    $region93: #{tpu_custom_call.1} parent=1 // pred_fallthru
      _
    %2437 = vsyncpa [#allocation3], 1
    %2438 = vsyncpa [#allocation6], 1
    %2439 = vsyncpa [#allocation9], 1
    %2440 = vsyncpa [#allocation12], 1
    %2441 = vsyncpa [#allocation15], 1
    %2442 = vsyncpa [#allocation4], 1

</llo_original>
